<compile_context>
chip_gen: v7x
topology: tpu7x:2x2x1
jax: 0.10.0
libtpu: 0.0.40
codegen_flags: <defaults>
</compile_context>

<pallas_src>
import jax
import jax.numpy as jnp
from jax import lax
from jax.experimental import pallas as pl
from jax.experimental.pallas import tpu as pltpu

VOCAB = 32      # vocab_size
LATENT = 16     # input_size (latent dim; concatenated to the embedding)
HIDDEN = 32     # hidden_size
EMBED = 32      # embed_dim
BATCH = 2
SEQ = 8
BPAD = 8        # batch padded to the f32 sublane count

# row offsets inside the packed (128,128) weight slab
_R_TABLE = 0                        # embed @ W_ih_e (stacked gates)   rows  0:32
_R_WIHL = _R_TABLE + VOCAB          # W_ih_latent (stacked gates)      rows 32:48
_R_WL2H = _R_WIHL + LATENT          # latent2hid weight (lanes 0:H)    rows 48:64
_R_WHH = _R_WL2H + LATENT           # W_hh (stacked gates)             rows 64:96
_R_WVOC = _R_WHH + HIDDEN           # hid2vocab weight (lanes 0:V)     rows 96:128


def _vmem():
    return pl.BlockSpec(memory_space=pltpu.MemorySpace.VMEM)


# --------------------------------------------------------------- fused kernel
def _fused_kernel(vecs_ref, tok_ref, msk_ref, w_ref, b_ref, loss_ref, hsc_ref):
    # vecs:(8,L)  tok:(T*8,2) int32 [in|out]  msk:(T*8,2) f32 [in|out]
    # w:(128,128) packed weight slab   b:(8,128) packed bias slab
    # loss:(1,1)  hsc scratch:(T,8,H)
    # Rows of the flattened time arrays are t-major: row = t*8 + b.
    Bp = vecs_ref.shape[0]
    NSB = tok_ref.shape[0]
    T = NSB // Bp
    H = HIDDEN
    V = VOCAB

    vecs = vecs_ref[...]                                               # (8, L)

    # packed weights (all slices sublane-aligned, 128-lane wide)
    table_e = w_ref[_R_TABLE:_R_TABLE + V, :]        # (V,128)  embed @ W_ih_e
    w_ihl = w_ref[_R_WIHL:_R_WIHL + LATENT, :]       # (L,128)
    w_l2h = w_ref[_R_WL2H:_R_WL2H + LATENT, :]       # (L,128)  lanes 0:H valid
    w_hh = w_ref[_R_WHH:_R_WHH + H, :]               # (H,128)  stacked r|z|n
    w_voc = w_ref[_R_WVOC:_R_WVOC + H, :]            # (H,128)  lanes 0:V valid

    b_l2h = b_ref[0:1, :]     # lanes 0:H
    b_gi = b_ref[1:2, :]      # lanes 0:3H : (b_ih+b_hh)_r | (b_ih+b_hh)_z | b_ih_n
    b_hn = b_ref[2:3, :]      # lanes 2H:3H : b_hh_n (zeros elsewhere)
    b_voc = b_ref[3:4, :]     # lanes 0:V

    # ---- init hidden: latent2hid (single affine) ----------------------------
    h = (jnp.dot(vecs, w_l2h, preferred_element_type=jnp.float32)
         + b_l2h)[:, :H]                                               # (8, H)

    # ---- hoisted, recurrence-independent work --------------------------------
    ids_v = lax.broadcasted_iota(jnp.int32, (NSB, V), 1)
    tok_in = tok_ref[:, 0:1]
    tok_out = tok_ref[:, 1:2]
    oh_in = (ids_v == tok_in).astype(jnp.float32)                      # (NSB, V)
    # one matmul for all timesteps & all gates (embedding precomposed in table)
    gi_e = jnp.dot(oh_in, table_e, preferred_element_type=jnp.float32)  # (NSB,128)
    # latent part (constant over time), biases folded
    gi_l = jnp.dot(vecs, w_ihl, preferred_element_type=jnp.float32) + b_gi  # (8,128)
    gi = gi_e.reshape(T, Bp, 128) + gi_l[None]                         # (T,8,128)
    m_in = msk_ref[:, 0:1].reshape(T, Bp, 1)                           # (T,8,1)
    m_out = msk_ref[:, 1:2]                                            # (NSB,1)

    w_hh_bf = w_hh.astype(jnp.bfloat16)     # single-pass MXU on the serial chain

    # ---- serial GRU recurrence: ONE stacked matmul per step ------------------
    for t in range(T):
        gh = jnp.dot(h.astype(jnp.bfloat16), w_hh_bf,
                     preferred_element_type=jnp.float32) + b_hn        # (8,128)
        pre = gi[t]                                                    # (8,128)
        r = jax.nn.sigmoid(pre[:, 0:H] + gh[:, 0:H])
        z = jax.nn.sigmoid(pre[:, H:2 * H] + gh[:, H:2 * H])
        n = jnp.tanh(pre[:, 2 * H:3 * H] + r * gh[:, 2 * H:3 * H])
        h_new = (1.0 - z) * n + z * h
        m_t = m_in[t]                                                  # (8,1)
        h = m_t * h_new + (1.0 - m_t) * h                              # masked update
        hsc_ref[t] = h                                                 # aligned store

    # ---- hid2vocab + masked cross entropy (single slab, stays in VMEM) -------
    hs = hsc_ref[...].reshape(NSB, H)                                  # (T*8, H)
    logits = (jnp.dot(hs, w_voc, preferred_element_type=jnp.float32)
              + b_voc)[:, :V]                                          # (NSB, V)
    mx = jnp.max(logits, axis=-1, keepdims=True)
    lse = mx + jnp.log(jnp.sum(jnp.exp(logits - mx), axis=-1, keepdims=True))
    tgt_logit = jnp.sum(jnp.where(ids_v == tok_out, logits, 0.0),
                        axis=-1, keepdims=True)
    ll = (lse - tgt_logit) * m_out                                     # (NSB,1)

    num = jnp.sum(ll.reshape(T, Bp, 1), axis=0)                        # (8,1)
    den = jnp.sum(m_out.reshape(T, Bp, 1), axis=0)                     # (8,1)
    seq_loss = num / jnp.maximum(den, 1.0)        # guard: pad rows have den=0
    row_valid = (lax.broadcasted_iota(jnp.int32, (Bp, 1), 0)
                 < BATCH).astype(jnp.float32)
    loss_ref[...] = (jnp.sum(seq_loss * row_valid) / float(BATCH)).reshape(1, 1)


# --------------------------------------------------------- param preparation
def _pad_lanes(x, width=128):
    return jnp.pad(x, ((0, 0), (0, width - x.shape[1])))


def prepare_params(p):
    """One-time packing of natural params into 2 DMA-friendly slabs."""
    H = HIDDEN
    w_ih_e_stack = jnp.concatenate([p["w_ih_e"][g] for g in range(3)], axis=1)  # (E,3H)
    table_e = _pad_lanes(p["embed"] @ w_ih_e_stack)                             # (V,128)
    w_ihl = _pad_lanes(jnp.concatenate([p["w_ih_l"][g] for g in range(3)], axis=1))
    w_l2h = _pad_lanes(p["w_l2h"])
    w_hh = _pad_lanes(jnp.concatenate([p["w_hh"][g] for g in range(3)], axis=1))
    w_voc = _pad_lanes(p["w_hid2vocab"])
    w_pack = jnp.concatenate([table_e, w_ihl, w_l2h, w_hh, w_voc], axis=0)      # (128,128)

    b_l2h = _pad_lanes(p["b_l2h"])
    b_gi = _pad_lanes(jnp.concatenate(
        [p["b_ih"][0] + p["b_hh"][0], p["b_ih"][1] + p["b_hh"][1], p["b_ih"][2]],
        axis=1))
    b_hn = _pad_lanes(jnp.concatenate(
        [jnp.zeros((1, 2 * H), jnp.float32), p["b_hh"][2]], axis=1))
    b_voc = _pad_lanes(p["b_hid2vocab"])
    b_pack = jnp.concatenate(
        [b_l2h, b_gi, b_hn, b_voc, jnp.zeros((4, 128), jnp.float32)], axis=0)   # (8,128)
    return {"w_pack": w_pack, "b_pack": b_pack}


# ------------------------------------------------------------------- forward
def gru_cat_forward(packed, input_vecs, tgts, tgts_mask):
    B, S = tgts.shape
    T = S - 1
    Bp = BPAD
    # pad batch to 8 sublanes; pad rows get zero mask so they never contribute
    vecs_pad = jnp.zeros((Bp, LATENT), jnp.float32).at[:B].set(input_vecs)
    tok_tm = jnp.zeros((S, Bp), jnp.int32).at[:, :B].set(
        jnp.transpose(tgts.astype(jnp.int32)))
    msk_tm = jnp.zeros((S, Bp), jnp.float32).at[:, :B].set(
        jnp.transpose(tgts_mask.astype(jnp.float32)))
    tok = jnp.stack([tok_tm[:T].reshape(T * Bp),
                     tok_tm[1:].reshape(T * Bp)], axis=1)              # (T*8, 2)
    msk = jnp.stack([msk_tm[:T].reshape(T * Bp),
                     msk_tm[1:].reshape(T * Bp)], axis=1)              # (T*8, 2)

    loss = pl.pallas_call(
        _fused_kernel,
        out_shape=jax.ShapeDtypeStruct((1, 1), jnp.float32),
        in_specs=[_vmem() for _ in range(5)],
        out_specs=_vmem(),
        scratch_shapes=[pltpu.VMEM((T, Bp, HIDDEN), jnp.float32)],
    )(vecs_pad, tok, msk, packed["w_pack"], packed["b_pack"])
    return loss[0, 0]


# -------------------------------------------------------------------- params
def make_params(key):
    ks = jax.random.split(key, 10)
    s = 0.1
    return {
        "embed": s * jax.random.normal(ks[0], (VOCAB, EMBED), jnp.float32),
        # latent2hid (get_mlp assumed single Linear LATENT -> HIDDEN), stored transposed
        "w_l2h": s * jax.random.normal(ks[1], (LATENT, HIDDEN), jnp.float32),
        "b_l2h": s * jax.random.normal(ks[2], (1, HIDDEN), jnp.float32),
        # GRU(embed_dim + input_size -> HIDDEN); gates r|z|n on the leading dim,
        # input-hidden weights split into embedding part (E,H) and latent part (L,H)
        "w_ih_e": s * jax.random.normal(ks[3], (3, EMBED, HIDDEN), jnp.float32),
        "w_ih_l": s * jax.random.normal(ks[4], (3, LATENT, HIDDEN), jnp.float32),
        "w_hh": s * jax.random.normal(ks[5], (3, HIDDEN, HIDDEN), jnp.float32),
        "b_ih": s * jax.random.normal(ks[6], (3, 1, HIDDEN), jnp.float32),
        "b_hh": s * jax.random.normal(ks[7], (3, 1, HIDDEN), jnp.float32),
        # hid2vocab: Linear(HIDDEN -> VOCAB), tie_weight=False
        "w_hid2vocab": s * jax.random.normal(ks[8], (HIDDEN, VOCAB), jnp.float32),
        "b_hid2vocab": jnp.zeros((1, VOCAB), jnp.float32),
    }


# --------------------------------------------------------- pure-JAX reference
def reference_forward(params, input_vecs, tgts, tgts_mask):
    B, S = tgts.shape
    h = input_vecs @ params["w_l2h"] + params["b_l2h"]
    emb = params["embed"][tgts]
    num = jnp.zeros((B,), jnp.float32)
    den = jnp.zeros((B,), jnp.float32)
    for t in range(S - 1):
        x = emb[:, t, :]
        gi = [x @ params["w_ih_e"][g] + input_vecs @ params["w_ih_l"][g]
              + params["b_ih"][g] for g in range(3)]
        gh = [h @ params["w_hh"][g] + params["b_hh"][g] for g in range(3)]
        r = jax.nn.sigmoid(gi[0] + gh[0])
        z = jax.nn.sigmoid(gi[1] + gh[1])
        n = jnp.tanh(gi[2] + r * gh[2])
        h_new = (1.0 - z) * n + z * h
        m = tgts_mask[:, t][:, None]
        h = m * h_new + (1.0 - m) * h
        logits = h @ params["w_hid2vocab"] + params["b_hid2vocab"]
        ll = jax.nn.logsumexp(logits, axis=-1) - jnp.take_along_axis(
            logits, tgts[:, t + 1][:, None], axis=-1)[:, 0]
        num = num + ll * tgts_mask[:, t + 1]
        den = den + tgts_mask[:, t + 1]
    return jnp.mean(num / den)


if __name__ == "__main__":
    key = jax.random.PRNGKey(0)
    k_p, k_v, k_t = jax.random.split(key, 3)

    params = make_params(k_p)
    input_vecs = jax.random.normal(k_v, (BATCH, LATENT), jnp.float32)
    tgts = jax.random.randint(k_t, (BATCH, SEQ), 0, VOCAB, dtype=jnp.int32)
    # mask: sequence lengths [8, 6]
    lengths = jnp.array([SEQ, SEQ - 2], jnp.int32)
    tgts_mask = (jnp.arange(SEQ)[None, :] < lengths[:, None]).astype(jnp.float32)

    packed = prepare_params(params)   # one-time weight packing (outside hot path)
    loss = jax.jit(gru_cat_forward)(packed, input_vecs, tgts, tgts_mask)
    jax.block_until_ready(loss)

    ref = reference_forward(params, input_vecs, tgts, tgts_mask)
    assert loss.shape == () and bool(jnp.isfinite(loss))
    assert abs(float(loss) - float(ref)) < 5e-2, (float(loss), float(ref))
    print("KERNEL_OK")
</pallas_src>

<mosaic_0001>
module attributes {stable_mosaic.version = 11 : i64} {
  func.func @_fused_kernel(%arg0: memref<8x16xf32, #tpu.memory_space<vmem>>, %arg1: memref<56x2xi32, #tpu.memory_space<vmem>>, %arg2: memref<56x2xf32, #tpu.memory_space<vmem>>, %arg3: memref<128x128xf32, #tpu.memory_space<vmem>>, %arg4: memref<8x128xf32, #tpu.memory_space<vmem>>, %arg5: memref<1x1xf32, #tpu.memory_space<vmem>>, %arg6: memref<7x8x32xf32, #tpu.memory_space<vmem>>) attributes {dimension_semantics = [], scalar_prefetch = 0 : i64, scratch_operands = 1 : i64, tpu.core_type = #tpu.core_type<tc>} {
    %c0 = arith.constant 0 : index
    %c0_0 = arith.constant 0 : index
    %0 = vector.load %arg0[%c0, %c0_0] : memref<8x16xf32, #tpu.memory_space<vmem>>, vector<8x16xf32>
    %c0_1 = arith.constant 0 : index
    %c0_2 = arith.constant 0 : index
    %1 = vector.load %arg3[%c0_1, %c0_2] : memref<128x128xf32, #tpu.memory_space<vmem>>, vector<32x128xf32>
    %c32 = arith.constant 32 : index
    %c0_3 = arith.constant 0 : index
    %2 = vector.load %arg3[%c32, %c0_3] : memref<128x128xf32, #tpu.memory_space<vmem>>, vector<16x128xf32>
    %c48 = arith.constant 48 : index
    %c0_4 = arith.constant 0 : index
    %3 = vector.load %arg3[%c48, %c0_4] : memref<128x128xf32, #tpu.memory_space<vmem>>, vector<16x128xf32>
    %c64 = arith.constant 64 : index
    %c0_5 = arith.constant 0 : index
    %4 = vector.load %arg3[%c64, %c0_5] : memref<128x128xf32, #tpu.memory_space<vmem>>, vector<32x128xf32>
    %c96 = arith.constant 96 : index
    %c0_6 = arith.constant 0 : index
    %5 = vector.load %arg3[%c96, %c0_6] : memref<128x128xf32, #tpu.memory_space<vmem>>, vector<32x128xf32>
    %c0_7 = arith.constant 0 : index
    %c0_8 = arith.constant 0 : index
    %6 = vector.load %arg4[%c0_7, %c0_8] : memref<8x128xf32, #tpu.memory_space<vmem>>, vector<1x128xf32>
    %c1 = arith.constant 1 : index
    %c0_9 = arith.constant 0 : index
    %7 = vector.load %arg4[%c1, %c0_9] : memref<8x128xf32, #tpu.memory_space<vmem>>, vector<1x128xf32>
    %c2 = arith.constant 2 : index
    %c0_10 = arith.constant 0 : index
    %8 = vector.load %arg4[%c2, %c0_10] : memref<8x128xf32, #tpu.memory_space<vmem>>, vector<1x128xf32>
    %c3 = arith.constant 3 : index
    %c0_11 = arith.constant 0 : index
    %9 = vector.load %arg4[%c3, %c0_11] : memref<8x128xf32, #tpu.memory_space<vmem>>, vector<1x128xf32>
    %cst = arith.constant dense<0.000000e+00> : vector<8x128xf32>
    %10 = tpu.matmul %0, %3, %cst {dimension_numbers = #tpu.dot_dimension_numbers<[1], [0], [0], [1], [0, 0, 1, 1], [], []>} : vector<8x16xf32>, vector<16x128xf32>, vector<8x128xf32> -> vector<8x128xf32>
    %11 = vector.broadcast %6 : vector<1x128xf32> to vector<8x128xf32>
    %12 = arith.addf %10, %11 : vector<8x128xf32>
    %13 = vector.extract_strided_slice %12 {offsets = [0, 0], sizes = [8, 32], strides = [1, 1]} : vector<8x128xf32> to vector<8x32xf32>
    %14 = tpu.iota {dimensions = array<i32: 1>} : vector<56x32xi32>
    %c0_12 = arith.constant 0 : index
    %c0_13 = arith.constant 0 : index
    %15 = vector.load %arg1[%c0_12, %c0_13] : memref<56x2xi32, #tpu.memory_space<vmem>>, vector<56x1xi32>
    %c0_14 = arith.constant 0 : index
    %c1_15 = arith.constant 1 : index
    %16 = vector.load %arg1[%c0_14, %c1_15] : memref<56x2xi32, #tpu.memory_space<vmem>>, vector<56x1xi32>
    %17 = vector.broadcast %15 : vector<56x1xi32> to vector<56x32xi32>
    %18 = arith.cmpi eq, %14, %17 : vector<56x32xi32>
    %19 = arith.extui %18 : vector<56x32xi1> to vector<56x32xi32>
    %20 = arith.sitofp %19 : vector<56x32xi32> to vector<56x32xf32>
    %cst_16 = arith.constant dense<0.000000e+00> : vector<56x128xf32>
    %21 = tpu.matmul %20, %1, %cst_16 {dimension_numbers = #tpu.dot_dimension_numbers<[1], [0], [0], [1], [0, 0, 1, 1], [], []>} : vector<56x32xf32>, vector<32x128xf32>, vector<56x128xf32> -> vector<56x128xf32>
    %cst_17 = arith.constant dense<0.000000e+00> : vector<8x128xf32>
    %22 = tpu.matmul %0, %2, %cst_17 {dimension_numbers = #tpu.dot_dimension_numbers<[1], [0], [0], [1], [0, 0, 1, 1], [], []>} : vector<8x16xf32>, vector<16x128xf32>, vector<8x128xf32> -> vector<8x128xf32>
    %23 = vector.broadcast %7 : vector<1x128xf32> to vector<8x128xf32>
    %24 = arith.addf %22, %23 : vector<8x128xf32>
    %25 = vector.shape_cast %21 : vector<56x128xf32> to vector<7x8x128xf32>
    %26 = vector.shape_cast %24 : vector<8x128xf32> to vector<1x8x128xf32>
    %27 = vector.broadcast %26 : vector<1x8x128xf32> to vector<7x8x128xf32>
    %28 = arith.addf %25, %27 : vector<7x8x128xf32>
    %c0_18 = arith.constant 0 : index
    %c0_19 = arith.constant 0 : index
    %29 = vector.load %arg2[%c0_18, %c0_19] : memref<56x2xf32, #tpu.memory_space<vmem>>, vector<56x1xf32>
    %30 = vector.shape_cast %29 : vector<56x1xf32> to vector<7x8x1xf32>
    %c0_20 = arith.constant 0 : index
    %c1_21 = arith.constant 1 : index
    %31 = vector.load %arg2[%c0_20, %c1_21] : memref<56x2xf32, #tpu.memory_space<vmem>>, vector<56x1xf32>
    %32 = arith.truncf %4 : vector<32x128xf32> to vector<32x128xbf16>
    %33 = arith.truncf %13 : vector<8x32xf32> to vector<8x32xbf16>
    %cst_22 = arith.constant dense<0.000000e+00> : vector<8x128xf32>
    %34 = tpu.matmul %33, %32, %cst_22 {dimension_numbers = #tpu.dot_dimension_numbers<[1], [0], [0], [1], [0, 0, 1, 1], [], []>} : vector<8x32xbf16>, vector<32x128xbf16>, vector<8x128xf32> -> vector<8x128xf32>
    %35 = vector.broadcast %8 : vector<1x128xf32> to vector<8x128xf32>
    %36 = arith.addf %34, %35 : vector<8x128xf32>
    %37 = vector.extract_strided_slice %28 {offsets = [0, 0, 0], sizes = [1, 8, 128], strides = [1, 1, 1]} : vector<7x8x128xf32> to vector<1x8x128xf32>
    %38 = vector.shape_cast %37 : vector<1x8x128xf32> to vector<8x128xf32>
    %39 = vector.extract_strided_slice %38 {offsets = [0, 0], sizes = [8, 32], strides = [1, 1]} : vector<8x128xf32> to vector<8x32xf32>
    %40 = vector.extract_strided_slice %36 {offsets = [0, 0], sizes = [8, 32], strides = [1, 1]} : vector<8x128xf32> to vector<8x32xf32>
    %41 = arith.addf %39, %40 : vector<8x32xf32>
    %42 = arith.negf %41 : vector<8x32xf32>
    %43 = math.exp %42 : vector<8x32xf32>
    %cst_23 = arith.constant 1.000000e+00 : f32
    %44 = vector.broadcast %cst_23 : f32 to vector<8x32xf32>
    %45 = arith.addf %44, %43 : vector<8x32xf32>
    %46 = arith.divf %44, %45 : vector<8x32xf32>
    %47 = vector.extract_strided_slice %38 {offsets = [0, 32], sizes = [8, 32], strides = [1, 1]} : vector<8x128xf32> to vector<8x32xf32>
    %48 = vector.extract_strided_slice %36 {offsets = [0, 32], sizes = [8, 32], strides = [1, 1]} : vector<8x128xf32> to vector<8x32xf32>
    %49 = arith.addf %47, %48 : vector<8x32xf32>
    %50 = arith.negf %49 : vector<8x32xf32>
    %51 = math.exp %50 : vector<8x32xf32>
    %cst_24 = arith.constant 1.000000e+00 : f32
    %52 = vector.broadcast %cst_24 : f32 to vector<8x32xf32>
    %53 = arith.addf %52, %51 : vector<8x32xf32>
    %54 = arith.divf %52, %53 : vector<8x32xf32>
    %55 = vector.extract_strided_slice %38 {offsets = [0, 64], sizes = [8, 32], strides = [1, 1]} : vector<8x128xf32> to vector<8x32xf32>
    %56 = vector.extract_strided_slice %36 {offsets = [0, 64], sizes = [8, 32], strides = [1, 1]} : vector<8x128xf32> to vector<8x32xf32>
    %57 = arith.mulf %46, %56 : vector<8x32xf32>
    %58 = arith.addf %55, %57 : vector<8x32xf32>
    %59 = math.tanh %58 : vector<8x32xf32>
    %cst_25 = arith.constant 1.000000e+00 : f32
    %60 = vector.broadcast %cst_25 : f32 to vector<8x32xf32>
    %61 = arith.subf %60, %54 : vector<8x32xf32>
    %62 = arith.mulf %61, %59 : vector<8x32xf32>
    %63 = arith.mulf %54, %13 : vector<8x32xf32>
    %64 = arith.addf %62, %63 : vector<8x32xf32>
    %65 = vector.extract_strided_slice %30 {offsets = [0, 0, 0], sizes = [1, 8, 1], strides = [1, 1, 1]} : vector<7x8x1xf32> to vector<1x8x1xf32>
    %66 = vector.shape_cast %65 : vector<1x8x1xf32> to vector<8x1xf32>
    %67 = vector.broadcast %66 : vector<8x1xf32> to vector<8x32xf32>
    %68 = arith.mulf %67, %64 : vector<8x32xf32>
    %cst_26 = arith.constant 1.000000e+00 : f32
    %69 = vector.broadcast %cst_26 : f32 to vector<8x1xf32>
    %70 = arith.subf %69, %66 : vector<8x1xf32>
    %71 = vector.broadcast %70 : vector<8x1xf32> to vector<8x32xf32>
    %72 = arith.mulf %71, %13 : vector<8x32xf32>
    %73 = arith.addf %68, %72 : vector<8x32xf32>
    %c0_27 = arith.constant 0 : index
    %c0_28 = arith.constant 0 : index
    %c0_29 = arith.constant 0 : index
    %74 = vector.load %arg6[%c0_27, %c0_28, %c0_29] : memref<7x8x32xf32, #tpu.memory_space<vmem>>, vector<1x8x32xf32>
    %75 = vector.shape_cast %74 : vector<1x8x32xf32> to vector<8x32xf32>
    %76 = vector.shape_cast %73 : vector<8x32xf32> to vector<1x8x32xf32>
    tpu.vector_store %arg6[%c0_27, %c0_28, %c0_29], %76 {strides = array<i32>} : memref<7x8x32xf32, #tpu.memory_space<vmem>>, vector<1x8x32xf32>,
    %77 = arith.truncf %73 : vector<8x32xf32> to vector<8x32xbf16>
    %cst_30 = arith.constant dense<0.000000e+00> : vector<8x128xf32>
    %78 = tpu.matmul %77, %32, %cst_30 {dimension_numbers = #tpu.dot_dimension_numbers<[1], [0], [0], [1], [0, 0, 1, 1], [], []>} : vector<8x32xbf16>, vector<32x128xbf16>, vector<8x128xf32> -> vector<8x128xf32>
    %79 = vector.broadcast %8 : vector<1x128xf32> to vector<8x128xf32>
    %80 = arith.addf %78, %79 : vector<8x128xf32>
    %81 = vector.extract_strided_slice %28 {offsets = [1, 0, 0], sizes = [1, 8, 128], strides = [1, 1, 1]} : vector<7x8x128xf32> to vector<1x8x128xf32>
    %82 = vector.shape_cast %81 : vector<1x8x128xf32> to vector<8x128xf32>
    %83 = vector.extract_strided_slice %82 {offsets = [0, 0], sizes = [8, 32], strides = [1, 1]} : vector<8x128xf32> to vector<8x32xf32>
    %84 = vector.extract_strided_slice %80 {offsets = [0, 0], sizes = [8, 32], strides = [1, 1]} : vector<8x128xf32> to vector<8x32xf32>
    %85 = arith.addf %83, %84 : vector<8x32xf32>
    %86 = arith.negf %85 : vector<8x32xf32>
    %87 = math.exp %86 : vector<8x32xf32>
    %cst_31 = arith.constant 1.000000e+00 : f32
    %88 = vector.broadcast %cst_31 : f32 to vector<8x32xf32>
    %89 = arith.addf %88, %87 : vector<8x32xf32>
    %90 = arith.divf %88, %89 : vector<8x32xf32>
    %91 = vector.extract_strided_slice %82 {offsets = [0, 32], sizes = [8, 32], strides = [1, 1]} : vector<8x128xf32> to vector<8x32xf32>
    %92 = vector.extract_strided_slice %80 {offsets = [0, 32], sizes = [8, 32], strides = [1, 1]} : vector<8x128xf32> to vector<8x32xf32>
    %93 = arith.addf %91, %92 : vector<8x32xf32>
    %94 = arith.negf %93 : vector<8x32xf32>
    %95 = math.exp %94 : vector<8x32xf32>
    %cst_32 = arith.constant 1.000000e+00 : f32
    %96 = vector.broadcast %cst_32 : f32 to vector<8x32xf32>
    %97 = arith.addf %96, %95 : vector<8x32xf32>
    %98 = arith.divf %96, %97 : vector<8x32xf32>
    %99 = vector.extract_strided_slice %82 {offsets = [0, 64], sizes = [8, 32], strides = [1, 1]} : vector<8x128xf32> to vector<8x32xf32>
    %100 = vector.extract_strided_slice %80 {offsets = [0, 64], sizes = [8, 32], strides = [1, 1]} : vector<8x128xf32> to vector<8x32xf32>
    %101 = arith.mulf %90, %100 : vector<8x32xf32>
    %102 = arith.addf %99, %101 : vector<8x32xf32>
    %103 = math.tanh %102 : vector<8x32xf32>
    %cst_33 = arith.constant 1.000000e+00 : f32
    %104 = vector.broadcast %cst_33 : f32 to vector<8x32xf32>
    %105 = arith.subf %104, %98 : vector<8x32xf32>
    %106 = arith.mulf %105, %103 : vector<8x32xf32>
    %107 = arith.mulf %98, %73 : vector<8x32xf32>
    %108 = arith.addf %106, %107 : vector<8x32xf32>
    %109 = vector.extract_strided_slice %30 {offsets = [1, 0, 0], sizes = [1, 8, 1], strides = [1, 1, 1]} : vector<7x8x1xf32> to vector<1x8x1xf32>
    %110 = vector.shape_cast %109 : vector<1x8x1xf32> to vector<8x1xf32>
    %111 = vector.broadcast %110 : vector<8x1xf32> to vector<8x32xf32>
    %112 = arith.mulf %111, %108 : vector<8x32xf32>
    %cst_34 = arith.constant 1.000000e+00 : f32
    %113 = vector.broadcast %cst_34 : f32 to vector<8x1xf32>
    %114 = arith.subf %113, %110 : vector<8x1xf32>
    %115 = vector.broadcast %114 : vector<8x1xf32> to vector<8x32xf32>
    %116 = arith.mulf %115, %73 : vector<8x32xf32>
    %117 = arith.addf %112, %116 : vector<8x32xf32>
    %c1_35 = arith.constant 1 : index
    %c0_36 = arith.constant 0 : index
    %c0_37 = arith.constant 0 : index
    %118 = vector.load %arg6[%c1_35, %c0_36, %c0_37] : memref<7x8x32xf32, #tpu.memory_space<vmem>>, vector<1x8x32xf32>
    %119 = vector.shape_cast %118 : vector<1x8x32xf32> to vector<8x32xf32>
    %120 = vector.shape_cast %117 : vector<8x32xf32> to vector<1x8x32xf32>
    tpu.vector_store %arg6[%c1_35, %c0_36, %c0_37], %120 {strides = array<i32>} : memref<7x8x32xf32, #tpu.memory_space<vmem>>, vector<1x8x32xf32>,
    %121 = arith.truncf %117 : vector<8x32xf32> to vector<8x32xbf16>
    %cst_38 = arith.constant dense<0.000000e+00> : vector<8x128xf32>
    %122 = tpu.matmul %121, %32, %cst_38 {dimension_numbers = #tpu.dot_dimension_numbers<[1], [0], [0], [1], [0, 0, 1, 1], [], []>} : vector<8x32xbf16>, vector<32x128xbf16>, vector<8x128xf32> -> vector<8x128xf32>
    %123 = vector.broadcast %8 : vector<1x128xf32> to vector<8x128xf32>
    %124 = arith.addf %122, %123 : vector<8x128xf32>
    %125 = vector.extract_strided_slice %28 {offsets = [2, 0, 0], sizes = [1, 8, 128], strides = [1, 1, 1]} : vector<7x8x128xf32> to vector<1x8x128xf32>
    %126 = vector.shape_cast %125 : vector<1x8x128xf32> to vector<8x128xf32>
    %127 = vector.extract_strided_slice %126 {offsets = [0, 0], sizes = [8, 32], strides = [1, 1]} : vector<8x128xf32> to vector<8x32xf32>
    %128 = vector.extract_strided_slice %124 {offsets = [0, 0], sizes = [8, 32], strides = [1, 1]} : vector<8x128xf32> to vector<8x32xf32>
    %129 = arith.addf %127, %128 : vector<8x32xf32>
    %130 = arith.negf %129 : vector<8x32xf32>
    %131 = math.exp %130 : vector<8x32xf32>
    %cst_39 = arith.constant 1.000000e+00 : f32
    %132 = vector.broadcast %cst_39 : f32 to vector<8x32xf32>
    %133 = arith.addf %132, %131 : vector<8x32xf32>
    %134 = arith.divf %132, %133 : vector<8x32xf32>
    %135 = vector.extract_strided_slice %126 {offsets = [0, 32], sizes = [8, 32], strides = [1, 1]} : vector<8x128xf32> to vector<8x32xf32>
    %136 = vector.extract_strided_slice %124 {offsets = [0, 32], sizes = [8, 32], strides = [1, 1]} : vector<8x128xf32> to vector<8x32xf32>
    %137 = arith.addf %135, %136 : vector<8x32xf32>
    %138 = arith.negf %137 : vector<8x32xf32>
    %139 = math.exp %138 : vector<8x32xf32>
    %cst_40 = arith.constant 1.000000e+00 : f32
    %140 = vector.broadcast %cst_40 : f32 to vector<8x32xf32>
    %141 = arith.addf %140, %139 : vector<8x32xf32>
    %142 = arith.divf %140, %141 : vector<8x32xf32>
    %143 = vector.extract_strided_slice %126 {offsets = [0, 64], sizes = [8, 32], strides = [1, 1]} : vector<8x128xf32> to vector<8x32xf32>
    %144 = vector.extract_strided_slice %124 {offsets = [0, 64], sizes = [8, 32], strides = [1, 1]} : vector<8x128xf32> to vector<8x32xf32>
    %145 = arith.mulf %134, %144 : vector<8x32xf32>
    %146 = arith.addf %143, %145 : vector<8x32xf32>
    %147 = math.tanh %146 : vector<8x32xf32>
    %cst_41 = arith.constant 1.000000e+00 : f32
    %148 = vector.broadcast %cst_41 : f32 to vector<8x32xf32>
    %149 = arith.subf %148, %142 : vector<8x32xf32>
    %150 = arith.mulf %149, %147 : vector<8x32xf32>
    %151 = arith.mulf %142, %117 : vector<8x32xf32>
    %152 = arith.addf %150, %151 : vector<8x32xf32>
    %153 = vector.extract_strided_slice %30 {offsets = [2, 0, 0], sizes = [1, 8, 1], strides = [1, 1, 1]} : vector<7x8x1xf32> to vector<1x8x1xf32>
    %154 = vector.shape_cast %153 : vector<1x8x1xf32> to vector<8x1xf32>
    %155 = vector.broadcast %154 : vector<8x1xf32> to vector<8x32xf32>
    %156 = arith.mulf %155, %152 : vector<8x32xf32>
    %cst_42 = arith.constant 1.000000e+00 : f32
    %157 = vector.broadcast %cst_42 : f32 to vector<8x1xf32>
    %158 = arith.subf %157, %154 : vector<8x1xf32>
    %159 = vector.broadcast %158 : vector<8x1xf32> to vector<8x32xf32>
    %160 = arith.mulf %159, %117 : vector<8x32xf32>
    %161 = arith.addf %156, %160 : vector<8x32xf32>
    %c2_43 = arith.constant 2 : index
    %c0_44 = arith.constant 0 : index
    %c0_45 = arith.constant 0 : index
    %162 = vector.load %arg6[%c2_43, %c0_44, %c0_45] : memref<7x8x32xf32, #tpu.memory_space<vmem>>, vector<1x8x32xf32>
    %163 = vector.shape_cast %162 : vector<1x8x32xf32> to vector<8x32xf32>
    %164 = vector.shape_cast %161 : vector<8x32xf32> to vector<1x8x32xf32>
    tpu.vector_store %arg6[%c2_43, %c0_44, %c0_45], %164 {strides = array<i32>} : memref<7x8x32xf32, #tpu.memory_space<vmem>>, vector<1x8x32xf32>,
    %165 = arith.truncf %161 : vector<8x32xf32> to vector<8x32xbf16>
    %cst_46 = arith.constant dense<0.000000e+00> : vector<8x128xf32>
    %166 = tpu.matmul %165, %32, %cst_46 {dimension_numbers = #tpu.dot_dimension_numbers<[1], [0], [0], [1], [0, 0, 1, 1], [], []>} : vector<8x32xbf16>, vector<32x128xbf16>, vector<8x128xf32> -> vector<8x128xf32>
    %167 = vector.broadcast %8 : vector<1x128xf32> to vector<8x128xf32>
    %168 = arith.addf %166, %167 : vector<8x128xf32>
    %169 = vector.extract_strided_slice %28 {offsets = [3, 0, 0], sizes = [1, 8, 128], strides = [1, 1, 1]} : vector<7x8x128xf32> to vector<1x8x128xf32>
    %170 = vector.shape_cast %169 : vector<1x8x128xf32> to vector<8x128xf32>
    %171 = vector.extract_strided_slice %170 {offsets = [0, 0], sizes = [8, 32], strides = [1, 1]} : vector<8x128xf32> to vector<8x32xf32>
    %172 = vector.extract_strided_slice %168 {offsets = [0, 0], sizes = [8, 32], strides = [1, 1]} : vector<8x128xf32> to vector<8x32xf32>
    %173 = arith.addf %171, %172 : vector<8x32xf32>
    %174 = arith.negf %173 : vector<8x32xf32>
    %175 = math.exp %174 : vector<8x32xf32>
    %cst_47 = arith.constant 1.000000e+00 : f32
    %176 = vector.broadcast %cst_47 : f32 to vector<8x32xf32>
    %177 = arith.addf %176, %175 : vector<8x32xf32>
    %178 = arith.divf %176, %177 : vector<8x32xf32>
    %179 = vector.extract_strided_slice %170 {offsets = [0, 32], sizes = [8, 32], strides = [1, 1]} : vector<8x128xf32> to vector<8x32xf32>
    %180 = vector.extract_strided_slice %168 {offsets = [0, 32], sizes = [8, 32], strides = [1, 1]} : vector<8x128xf32> to vector<8x32xf32>
    %181 = arith.addf %179, %180 : vector<8x32xf32>
    %182 = arith.negf %181 : vector<8x32xf32>
    %183 = math.exp %182 : vector<8x32xf32>
    %cst_48 = arith.constant 1.000000e+00 : f32
    %184 = vector.broadcast %cst_48 : f32 to vector<8x32xf32>
    %185 = arith.addf %184, %183 : vector<8x32xf32>
    %186 = arith.divf %184, %185 : vector<8x32xf32>
    %187 = vector.extract_strided_slice %170 {offsets = [0, 64], sizes = [8, 32], strides = [1, 1]} : vector<8x128xf32> to vector<8x32xf32>
    %188 = vector.extract_strided_slice %168 {offsets = [0, 64], sizes = [8, 32], strides = [1, 1]} : vector<8x128xf32> to vector<8x32xf32>
    %189 = arith.mulf %178, %188 : vector<8x32xf32>
    %190 = arith.addf %187, %189 : vector<8x32xf32>
    %191 = math.tanh %190 : vector<8x32xf32>
    %cst_49 = arith.constant 1.000000e+00 : f32
    %192 = vector.broadcast %cst_49 : f32 to vector<8x32xf32>
    %193 = arith.subf %192, %186 : vector<8x32xf32>
    %194 = arith.mulf %193, %191 : vector<8x32xf32>
    %195 = arith.mulf %186, %161 : vector<8x32xf32>
    %196 = arith.addf %194, %195 : vector<8x32xf32>
    %197 = vector.extract_strided_slice %30 {offsets = [3, 0, 0], sizes = [1, 8, 1], strides = [1, 1, 1]} : vector<7x8x1xf32> to vector<1x8x1xf32>
    %198 = vector.shape_cast %197 : vector<1x8x1xf32> to vector<8x1xf32>
    %199 = vector.broadcast %198 : vector<8x1xf32> to vector<8x32xf32>
    %200 = arith.mulf %199, %196 : vector<8x32xf32>
    %cst_50 = arith.constant 1.000000e+00 : f32
    %201 = vector.broadcast %cst_50 : f32 to vector<8x1xf32>
    %202 = arith.subf %201, %198 : vector<8x1xf32>
    %203 = vector.broadcast %202 : vector<8x1xf32> to vector<8x32xf32>
    %204 = arith.mulf %203, %161 : vector<8x32xf32>
    %205 = arith.addf %200, %204 : vector<8x32xf32>
    %c3_51 = arith.constant 3 : index
    %c0_52 = arith.constant 0 : index
    %c0_53 = arith.constant 0 : index
    %206 = vector.load %arg6[%c3_51, %c0_52, %c0_53] : memref<7x8x32xf32, #tpu.memory_space<vmem>>, vector<1x8x32xf32>
    %207 = vector.shape_cast %206 : vector<1x8x32xf32> to vector<8x32xf32>
    %208 = vector.shape_cast %205 : vector<8x32xf32> to vector<1x8x32xf32>
    tpu.vector_store %arg6[%c3_51, %c0_52, %c0_53], %208 {strides = array<i32>} : memref<7x8x32xf32, #tpu.memory_space<vmem>>, vector<1x8x32xf32>,
    %209 = arith.truncf %205 : vector<8x32xf32> to vector<8x32xbf16>
    %cst_54 = arith.constant dense<0.000000e+00> : vector<8x128xf32>
    %210 = tpu.matmul %209, %32, %cst_54 {dimension_numbers = #tpu.dot_dimension_numbers<[1], [0], [0], [1], [0, 0, 1, 1], [], []>} : vector<8x32xbf16>, vector<32x128xbf16>, vector<8x128xf32> -> vector<8x128xf32>
    %211 = vector.broadcast %8 : vector<1x128xf32> to vector<8x128xf32>
    %212 = arith.addf %210, %211 : vector<8x128xf32>
    %213 = vector.extract_strided_slice %28 {offsets = [4, 0, 0], sizes = [1, 8, 128], strides = [1, 1, 1]} : vector<7x8x128xf32> to vector<1x8x128xf32>
    %214 = vector.shape_cast %213 : vector<1x8x128xf32> to vector<8x128xf32>
    %215 = vector.extract_strided_slice %214 {offsets = [0, 0], sizes = [8, 32], strides = [1, 1]} : vector<8x128xf32> to vector<8x32xf32>
    %216 = vector.extract_strided_slice %212 {offsets = [0, 0], sizes = [8, 32], strides = [1, 1]} : vector<8x128xf32> to vector<8x32xf32>
    %217 = arith.addf %215, %216 : vector<8x32xf32>
    %218 = arith.negf %217 : vector<8x32xf32>
    %219 = math.exp %218 : vector<8x32xf32>
    %cst_55 = arith.constant 1.000000e+00 : f32
    %220 = vector.broadcast %cst_55 : f32 to vector<8x32xf32>
    %221 = arith.addf %220, %219 : vector<8x32xf32>
    %222 = arith.divf %220, %221 : vector<8x32xf32>
    %223 = vector.extract_strided_slice %214 {offsets = [0, 32], sizes = [8, 32], strides = [1, 1]} : vector<8x128xf32> to vector<8x32xf32>
    %224 = vector.extract_strided_slice %212 {offsets = [0, 32], sizes = [8, 32], strides = [1, 1]} : vector<8x128xf32> to vector<8x32xf32>
    %225 = arith.addf %223, %224 : vector<8x32xf32>
    %226 = arith.negf %225 : vector<8x32xf32>
    %227 = math.exp %226 : vector<8x32xf32>
    %cst_56 = arith.constant 1.000000e+00 : f32
    %228 = vector.broadcast %cst_56 : f32 to vector<8x32xf32>
    %229 = arith.addf %228, %227 : vector<8x32xf32>
    %230 = arith.divf %228, %229 : vector<8x32xf32>
    %231 = vector.extract_strided_slice %214 {offsets = [0, 64], sizes = [8, 32], strides = [1, 1]} : vector<8x128xf32> to vector<8x32xf32>
    %232 = vector.extract_strided_slice %212 {offsets = [0, 64], sizes = [8, 32], strides = [1, 1]} : vector<8x128xf32> to vector<8x32xf32>
    %233 = arith.mulf %222, %232 : vector<8x32xf32>
    %234 = arith.addf %231, %233 : vector<8x32xf32>
    %235 = math.tanh %234 : vector<8x32xf32>
    %cst_57 = arith.constant 1.000000e+00 : f32
    %236 = vector.broadcast %cst_57 : f32 to vector<8x32xf32>
    %237 = arith.subf %236, %230 : vector<8x32xf32>
    %238 = arith.mulf %237, %235 : vector<8x32xf32>
    %239 = arith.mulf %230, %205 : vector<8x32xf32>
    %240 = arith.addf %238, %239 : vector<8x32xf32>
    %241 = vector.extract_strided_slice %30 {offsets = [4, 0, 0], sizes = [1, 8, 1], strides = [1, 1, 1]} : vector<7x8x1xf32> to vector<1x8x1xf32>
    %242 = vector.shape_cast %241 : vector<1x8x1xf32> to vector<8x1xf32>
    %243 = vector.broadcast %242 : vector<8x1xf32> to vector<8x32xf32>
    %244 = arith.mulf %243, %240 : vector<8x32xf32>
    %cst_58 = arith.constant 1.000000e+00 : f32
    %245 = vector.broadcast %cst_58 : f32 to vector<8x1xf32>
    %246 = arith.subf %245, %242 : vector<8x1xf32>
    %247 = vector.broadcast %246 : vector<8x1xf32> to vector<8x32xf32>
    %248 = arith.mulf %247, %205 : vector<8x32xf32>
    %249 = arith.addf %244, %248 : vector<8x32xf32>
    %c4 = arith.constant 4 : index
    %c0_59 = arith.constant 0 : index
    %c0_60 = arith.constant 0 : index
    %250 = vector.load %arg6[%c4, %c0_59, %c0_60] : memref<7x8x32xf32, #tpu.memory_space<vmem>>, vector<1x8x32xf32>
    %251 = vector.shape_cast %250 : vector<1x8x32xf32> to vector<8x32xf32>
    %252 = vector.shape_cast %249 : vector<8x32xf32> to vector<1x8x32xf32>
    tpu.vector_store %arg6[%c4, %c0_59, %c0_60], %252 {strides = array<i32>} : memref<7x8x32xf32, #tpu.memory_space<vmem>>, vector<1x8x32xf32>,
    %253 = arith.truncf %249 : vector<8x32xf32> to vector<8x32xbf16>
    %cst_61 = arith.constant dense<0.000000e+00> : vector<8x128xf32>
    %254 = tpu.matmul %253, %32, %cst_61 {dimension_numbers = #tpu.dot_dimension_numbers<[1], [0], [0], [1], [0, 0, 1, 1], [], []>} : vector<8x32xbf16>, vector<32x128xbf16>, vector<8x128xf32> -> vector<8x128xf32>
    %255 = vector.broadcast %8 : vector<1x128xf32> to vector<8x128xf32>
    %256 = arith.addf %254, %255 : vector<8x128xf32>
    %257 = vector.extract_strided_slice %28 {offsets = [5, 0, 0], sizes = [1, 8, 128], strides = [1, 1, 1]} : vector<7x8x128xf32> to vector<1x8x128xf32>
    %258 = vector.shape_cast %257 : vector<1x8x128xf32> to vector<8x128xf32>
    %259 = vector.extract_strided_slice %258 {offsets = [0, 0], sizes = [8, 32], strides = [1, 1]} : vector<8x128xf32> to vector<8x32xf32>
    %260 = vector.extract_strided_slice %256 {offsets = [0, 0], sizes = [8, 32], strides = [1, 1]} : vector<8x128xf32> to vector<8x32xf32>
    %261 = arith.addf %259, %260 : vector<8x32xf32>
    %262 = arith.negf %261 : vector<8x32xf32>
    %263 = math.exp %262 : vector<8x32xf32>
    %cst_62 = arith.constant 1.000000e+00 : f32
    %264 = vector.broadcast %cst_62 : f32 to vector<8x32xf32>
    %265 = arith.addf %264, %263 : vector<8x32xf32>
    %266 = arith.divf %264, %265 : vector<8x32xf32>
    %267 = vector.extract_strided_slice %258 {offsets = [0, 32], sizes = [8, 32], strides = [1, 1]} : vector<8x128xf32> to vector<8x32xf32>
    %268 = vector.extract_strided_slice %256 {offsets = [0, 32], sizes = [8, 32], strides = [1, 1]} : vector<8x128xf32> to vector<8x32xf32>
    %269 = arith.addf %267, %268 : vector<8x32xf32>
    %270 = arith.negf %269 : vector<8x32xf32>
    %271 = math.exp %270 : vector<8x32xf32>
    %cst_63 = arith.constant 1.000000e+00 : f32
    %272 = vector.broadcast %cst_63 : f32 to vector<8x32xf32>
    %273 = arith.addf %272, %271 : vector<8x32xf32>
    %274 = arith.divf %272, %273 : vector<8x32xf32>
    %275 = vector.extract_strided_slice %258 {offsets = [0, 64], sizes = [8, 32], strides = [1, 1]} : vector<8x128xf32> to vector<8x32xf32>
    %276 = vector.extract_strided_slice %256 {offsets = [0, 64], sizes = [8, 32], strides = [1, 1]} : vector<8x128xf32> to vector<8x32xf32>
    %277 = arith.mulf %266, %276 : vector<8x32xf32>
    %278 = arith.addf %275, %277 : vector<8x32xf32>
    %279 = math.tanh %278 : vector<8x32xf32>
    %cst_64 = arith.constant 1.000000e+00 : f32
    %280 = vector.broadcast %cst_64 : f32 to vector<8x32xf32>
    %281 = arith.subf %280, %274 : vector<8x32xf32>
    %282 = arith.mulf %281, %279 : vector<8x32xf32>
    %283 = arith.mulf %274, %249 : vector<8x32xf32>
    %284 = arith.addf %282, %283 : vector<8x32xf32>
    %285 = vector.extract_strided_slice %30 {offsets = [5, 0, 0], sizes = [1, 8, 1], strides = [1, 1, 1]} : vector<7x8x1xf32> to vector<1x8x1xf32>
    %286 = vector.shape_cast %285 : vector<1x8x1xf32> to vector<8x1xf32>
    %287 = vector.broadcast %286 : vector<8x1xf32> to vector<8x32xf32>
    %288 = arith.mulf %287, %284 : vector<8x32xf32>
    %cst_65 = arith.constant 1.000000e+00 : f32
    %289 = vector.broadcast %cst_65 : f32 to vector<8x1xf32>
    %290 = arith.subf %289, %286 : vector<8x1xf32>
    %291 = vector.broadcast %290 : vector<8x1xf32> to vector<8x32xf32>
    %292 = arith.mulf %291, %249 : vector<8x32xf32>
    %293 = arith.addf %288, %292 : vector<8x32xf32>
    %c5 = arith.constant 5 : index
    %c0_66 = arith.constant 0 : index
    %c0_67 = arith.constant 0 : index
    %294 = vector.load %arg6[%c5, %c0_66, %c0_67] : memref<7x8x32xf32, #tpu.memory_space<vmem>>, vector<1x8x32xf32>
    %295 = vector.shape_cast %294 : vector<1x8x32xf32> to vector<8x32xf32>
    %296 = vector.shape_cast %293 : vector<8x32xf32> to vector<1x8x32xf32>
    tpu.vector_store %arg6[%c5, %c0_66, %c0_67], %296 {strides = array<i32>} : memref<7x8x32xf32, #tpu.memory_space<vmem>>, vector<1x8x32xf32>,
    %297 = arith.truncf %293 : vector<8x32xf32> to vector<8x32xbf16>
    %cst_68 = arith.constant dense<0.000000e+00> : vector<8x128xf32>
    %298 = tpu.matmul %297, %32, %cst_68 {dimension_numbers = #tpu.dot_dimension_numbers<[1], [0], [0], [1], [0, 0, 1, 1], [], []>} : vector<8x32xbf16>, vector<32x128xbf16>, vector<8x128xf32> -> vector<8x128xf32>
    %299 = vector.broadcast %8 : vector<1x128xf32> to vector<8x128xf32>
    %300 = arith.addf %298, %299 : vector<8x128xf32>
    %301 = vector.extract_strided_slice %28 {offsets = [6, 0, 0], sizes = [1, 8, 128], strides = [1, 1, 1]} : vector<7x8x128xf32> to vector<1x8x128xf32>
    %302 = vector.shape_cast %301 : vector<1x8x128xf32> to vector<8x128xf32>
    %303 = vector.extract_strided_slice %302 {offsets = [0, 0], sizes = [8, 32], strides = [1, 1]} : vector<8x128xf32> to vector<8x32xf32>
    %304 = vector.extract_strided_slice %300 {offsets = [0, 0], sizes = [8, 32], strides = [1, 1]} : vector<8x128xf32> to vector<8x32xf32>
    %305 = arith.addf %303, %304 : vector<8x32xf32>
    %306 = arith.negf %305 : vector<8x32xf32>
    %307 = math.exp %306 : vector<8x32xf32>
    %cst_69 = arith.constant 1.000000e+00 : f32
    %308 = vector.broadcast %cst_69 : f32 to vector<8x32xf32>
    %309 = arith.addf %308, %307 : vector<8x32xf32>
    %310 = arith.divf %308, %309 : vector<8x32xf32>
    %311 = vector.extract_strided_slice %302 {offsets = [0, 32], sizes = [8, 32], strides = [1, 1]} : vector<8x128xf32> to vector<8x32xf32>
    %312 = vector.extract_strided_slice %300 {offsets = [0, 32], sizes = [8, 32], strides = [1, 1]} : vector<8x128xf32> to vector<8x32xf32>
    %313 = arith.addf %311, %312 : vector<8x32xf32>
    %314 = arith.negf %313 : vector<8x32xf32>
    %315 = math.exp %314 : vector<8x32xf32>
    %cst_70 = arith.constant 1.000000e+00 : f32
    %316 = vector.broadcast %cst_70 : f32 to vector<8x32xf32>
    %317 = arith.addf %316, %315 : vector<8x32xf32>
    %318 = arith.divf %316, %317 : vector<8x32xf32>
    %319 = vector.extract_strided_slice %302 {offsets = [0, 64], sizes = [8, 32], strides = [1, 1]} : vector<8x128xf32> to vector<8x32xf32>
    %320 = vector.extract_strided_slice %300 {offsets = [0, 64], sizes = [8, 32], strides = [1, 1]} : vector<8x128xf32> to vector<8x32xf32>
    %321 = arith.mulf %310, %320 : vector<8x32xf32>
    %322 = arith.addf %319, %321 : vector<8x32xf32>
    %323 = math.tanh %322 : vector<8x32xf32>
    %cst_71 = arith.constant 1.000000e+00 : f32
    %324 = vector.broadcast %cst_71 : f32 to vector<8x32xf32>
    %325 = arith.subf %324, %318 : vector<8x32xf32>
    %326 = arith.mulf %325, %323 : vector<8x32xf32>
    %327 = arith.mulf %318, %293 : vector<8x32xf32>
    %328 = arith.addf %326, %327 : vector<8x32xf32>
    %329 = vector.extract_strided_slice %30 {offsets = [6, 0, 0], sizes = [1, 8, 1], strides = [1, 1, 1]} : vector<7x8x1xf32> to vector<1x8x1xf32>
    %330 = vector.shape_cast %329 : vector<1x8x1xf32> to vector<8x1xf32>
    %331 = vector.broadcast %330 : vector<8x1xf32> to vector<8x32xf32>
    %332 = arith.mulf %331, %328 : vector<8x32xf32>
    %cst_72 = arith.constant 1.000000e+00 : f32
    %333 = vector.broadcast %cst_72 : f32 to vector<8x1xf32>
    %334 = arith.subf %333, %330 : vector<8x1xf32>
    %335 = vector.broadcast %334 : vector<8x1xf32> to vector<8x32xf32>
    %336 = arith.mulf %335, %293 : vector<8x32xf32>
    %337 = arith.addf %332, %336 : vector<8x32xf32>
    %c6 = arith.constant 6 : index
    %c0_73 = arith.constant 0 : index
    %c0_74 = arith.constant 0 : index
    %338 = vector.load %arg6[%c6, %c0_73, %c0_74] : memref<7x8x32xf32, #tpu.memory_space<vmem>>, vector<1x8x32xf32>
    %339 = vector.shape_cast %338 : vector<1x8x32xf32> to vector<8x32xf32>
    %340 = vector.shape_cast %337 : vector<8x32xf32> to vector<1x8x32xf32>
    tpu.vector_store %arg6[%c6, %c0_73, %c0_74], %340 {strides = array<i32>} : memref<7x8x32xf32, #tpu.memory_space<vmem>>, vector<1x8x32xf32>,
    %c0_75 = arith.constant 0 : index
    %c0_76 = arith.constant 0 : index
    %c0_77 = arith.constant 0 : index
    %341 = vector.load %arg6[%c0_75, %c0_76, %c0_77] : memref<7x8x32xf32, #tpu.memory_space<vmem>>, vector<7x8x32xf32>
    %342 = vector.shape_cast %341 : vector<7x8x32xf32> to vector<56x32xf32>
    %cst_78 = arith.constant dense<0.000000e+00> : vector<56x128xf32>
    %343 = tpu.matmul %342, %5, %cst_78 {dimension_numbers = #tpu.dot_dimension_numbers<[1], [0], [0], [1], [0, 0, 1, 1], [], []>} : vector<56x32xf32>, vector<32x128xf32>, vector<56x128xf32> -> vector<56x128xf32>
    %344 = vector.broadcast %9 : vector<1x128xf32> to vector<56x128xf32>
    %345 = arith.addf %343, %344 : vector<56x128xf32>
    %346 = vector.extract_strided_slice %345 {offsets = [0, 0], sizes = [56, 32], strides = [1, 1]} : vector<56x128xf32> to vector<56x32xf32>
    %cst_79 = arith.constant dense<0xFF800000> : vector<56xf32>
    %347 = vector.multi_reduction <maximumf>, %346, %cst_79 [1] : vector<56x32xf32> to vector<56xf32>
    %348 = vector.shape_cast %347 : vector<56xf32> to vector<56x1xf32>
    %349 = vector.broadcast %348 : vector<56x1xf32> to vector<56x32xf32>
    %350 = arith.subf %346, %349 : vector<56x32xf32>
    %351 = math.exp %350 : vector<56x32xf32>
    %cst_80 = arith.constant dense<0.000000e+00> : vector<56xf32>
    %352 = vector.multi_reduction <add>, %351, %cst_80 [1] : vector<56x32xf32> to vector<56xf32>
    %353 = vector.shape_cast %352 : vector<56xf32> to vector<56x1xf32>
    %354 = math.log %353 : vector<56x1xf32>
    %355 = arith.addf %348, %354 : vector<56x1xf32>
    %356 = vector.broadcast %16 : vector<56x1xi32> to vector<56x32xi32>
    %357 = arith.cmpi eq, %14, %356 : vector<56x32xi32>
    %cst_81 = arith.constant 0.000000e+00 : f32
    %358 = vector.broadcast %cst_81 : f32 to vector<56x32xf32>
    %359 = arith.select %357, %346, %358 : vector<56x32xi1>, vector<56x32xf32>
    %cst_82 = arith.constant dense<0.000000e+00> : vector<56xf32>
    %360 = vector.multi_reduction <add>, %359, %cst_82 [1] : vector<56x32xf32> to vector<56xf32>
    %361 = vector.shape_cast %360 : vector<56xf32> to vector<56x1xf32>
    %362 = arith.subf %355, %361 : vector<56x1xf32>
    %363 = arith.mulf %362, %31 : vector<56x1xf32>
    %364 = vector.shape_cast %363 : vector<56x1xf32> to vector<7x8x1xf32>
    %cst_83 = arith.constant dense<0.000000e+00> : vector<8x1xf32>
    %365 = vector.multi_reduction <add>, %364, %cst_83 [0] : vector<7x8x1xf32> to vector<8x1xf32>
    %366 = vector.shape_cast %31 : vector<56x1xf32> to vector<7x8x1xf32>
    %cst_84 = arith.constant dense<0.000000e+00> : vector<8x1xf32>
    %367 = vector.multi_reduction <add>, %366, %cst_84 [0] : vector<7x8x1xf32> to vector<8x1xf32>
    %cst_85 = arith.constant 1.000000e+00 : f32
    %368 = vector.broadcast %cst_85 : f32 to vector<8x1xf32>
    %369 = arith.maximumf %367, %368 : vector<8x1xf32>
    %370 = arith.divf %365, %369 : vector<8x1xf32>
    %371 = tpu.iota {dimensions = array<i32: 0>} : vector<8x1xi32>
    %c2_i32 = arith.constant 2 : i32
    %372 = vector.broadcast %c2_i32 : i32 to vector<8x1xi32>
    %373 = arith.cmpi slt, %371, %372 : vector<8x1xi32>
    %374 = arith.extui %373 : vector<8x1xi1> to vector<8x1xi32>
    %375 = arith.sitofp %374 : vector<8x1xi32> to vector<8x1xf32>
    %376 = arith.mulf %370, %375 : vector<8x1xf32>
    %377 = vector.shape_cast %376 : vector<8x1xf32> to vector<1x8x1xf32>
    %cst_86 = arith.constant dense<0.000000e+00> : vector<1xf32>
    %378 = vector.multi_reduction <add>, %377, %cst_86 [1, 2] : vector<1x8x1xf32> to vector<1xf32>
    %379 = vector.shape_cast %378 : vector<1xf32> to vector<1x1x1xf32>
    %380 = vector.extract %379[0, 0, 0] : f32 from vector<1x1x1xf32>
    %cst_87 = arith.constant 2.000000e+00 : f32
    %381 = arith.divf %380, %cst_87 : f32
    %382 = vector.broadcast %381 : f32 to vector<1x1xf32>
    %c0_88 = arith.constant 0 : index
    %c0_89 = arith.constant 0 : index
    %383 = vector.load %arg5[%c0_88, %c0_89] : memref<1x1xf32, #tpu.memory_space<vmem>>, vector<1x1xf32>
    tpu.vector_store %arg5[%c0_88, %c0_89], %382 {strides = array<i32>} : memref<1x1xf32, #tpu.memory_space<vmem>>, vector<1x1xf32>,
    return
  }
}

</mosaic_0001>

<llo_original>
// kernel: gru_cat_forward.1
$region0: #{gru_cat_forward.1}
  #allocation0 [shape = 'u32[]', space=smem, size = 0x4, offset = 0x4, fixed_abs, tag = 'smem constant byte address 0x4 - core index']
  #allocation1 [shape = 'u32[144,128]{1,0:T(1,128)}', space=vmem, size = 0x12000, scoped, tag = 'internal scratch']
  #allocation2 [shape = 'f32[7,8,32]{2,1,0:T(8,128)}', space=vmem, size = 0x7000, scoped, tag = 'scratch operand']
  %s0 = inlined_call_operand.vmem [shape: f32[8,16], index: 0, kind: input, shape index: {}]
  %s1 = inlined_call_operand.vmem [shape: s32[56,2], index: 1, kind: input, shape index: {}]
  %s2 = inlined_call_operand.vmem [shape: f32[56,2], index: 2, kind: input, shape index: {}]
  %s3 = inlined_call_operand.vmem [shape: f32[128,128], index: 3, kind: input, shape index: {}]
  %s4 = inlined_call_operand.vmem [shape: f32[8,128], index: 4, kind: input, shape index: {}]
  %s5 = inlined_call_operand.hbm [shape: f32[1,1], index: 5, kind: output, shape index: {}]
  %s6 = sld [smem:[#allocation0]]
  $region30: #{gru_cat_forward.1} parent=0
    _
  %s8 = ssub.s32 1, %s6
  %s9 = scalar_select 0, %s8, %s6
  $region1: #{gru_cat_forward.1} parent=0
    #allocation3 [shape = 'u8[512]{0}', space=vmem, size = 0x400, scoped, tag = 'output window, operand 0, single buffered']
    #allocation4 [shape = 's32[1]{0}', space=sflag, size = 0x4, scoped, tag = 'scoped memory for gru_cat_forward.1']
    %10 = vsyncpa [#allocation4], 0
    // Predicated region
    $region2: #{gru_cat_forward.1} parent=1 // pred_check
      _
    $region3: #{gru_cat_forward.1} parent=1 // pred_check_branch
      %12 = sbr.rel (0) target = $region5
    $region4: #{gru_cat_forward.1} parent=1 // pred_region
      _
    $region5: #{gru_cat_forward.1} parent=1 // pred_fallthru
      _
    // Predicated region
    $region6: #{gru_cat_forward.1} parent=1 // pred_check
      _
    $region7: #{gru_cat_forward.1} parent=1 // pred_check_branch
      %14 = sbr.rel (0) target = $region9
    $region8: #{gru_cat_forward.1} parent=1 // pred_region
      _
    $region9: #{gru_cat_forward.1} parent=1 // pred_fallthru
      _
    // Predicated region
    $region10: #{gru_cat_forward.1} parent=1 // pred_check
      _
    $region11: #{gru_cat_forward.1} parent=1 // pred_check_branch
      %16 = sbr.rel (0) target = $region13
    $region12: #{gru_cat_forward.1} parent=1 // pred_region
      _
    $region13: #{gru_cat_forward.1} parent=1 // pred_fallthru
      _
    // Predicated region
    $region14: #{gru_cat_forward.1} parent=1 // pred_check
      _
    $region15: #{gru_cat_forward.1} parent=1 // pred_check_branch
      %18 = sbr.rel (0) target = $region17
    $region16: #{gru_cat_forward.1} parent=1 // pred_region
      _
    $region17: #{gru_cat_forward.1} parent=1 // pred_fallthru
      _
    // Predicated region
    $region18: #{gru_cat_forward.1} parent=1 // pred_check
      _
    $region19: #{gru_cat_forward.1} parent=1 // pred_check_branch
      %20 = sbr.rel (0) target = $region21
    $region20: #{gru_cat_forward.1} parent=1 // pred_region
      _
    $region21: #{gru_cat_forward.1} parent=1 // pred_fallthru
      _
    %v22 = vld [vmem:[%s0] sm:$0xff]
    %v23 = vld [vmem:[%s3] sm:$0xff]
    %v24 = vld [vmem:[%s3 + $0x8] sm:$0xff]
    %v25 = vld [vmem:[%s3 + $0x10] sm:$0xff]
    %v26 = vld [vmem:[%s3 + $0x18] sm:$0xff]
    %v27 = vld [vmem:[%s3 + $0x20] sm:$0xff]
    %v28 = vld [vmem:[%s3 + $0x28] sm:$0xff]
    %v29 = vld [vmem:[%s3 + $0x30] sm:$0xff]
    %v30 = vld [vmem:[%s3 + $0x38] sm:$0xff]
    %v31 = vld [vmem:[%s3 + $0x40] sm:$0xff]
    %v32 = vld [vmem:[%s3 + $0x48] sm:$0xff]
    %v33 = vld [vmem:[%s3 + $0x50] sm:$0xff]
    %v34 = vld [vmem:[%s3 + $0x58] sm:$0xff]
    %v35 = vld [vmem:[%s3 + $0x60] sm:$0xff]
    %v36 = vld [vmem:[%s3 + $0x68] sm:$0xff]
    %v37 = vld [vmem:[%s3 + $0x70] sm:$0xff]
    %v38 = vld [vmem:[%s3 + $0x78] sm:$0xff]
    %v39 = vld [vmem:[%s4] sm:$0x1]
    %v40 = vld [vmem:[%s4 + $0x1] sm:$0x1]
    %v41 = vld [vmem:[%s4 + $0x2] sm:$0x1]
    %v42 = vld [vmem:[%s4 + $0x3] sm:$0x1]
    %v43 = vlaneseq
    %v44 = vshrl.u32 %v43, 7
    %v45 = vsub.s32 0, %v44
    %v46 = vrot.slane %v39, %v45
    %vm47 = vcmask 130048
    %v49 = vsel %vm47, %v22, 0
    %51 = vmatprep.subr.mxu0 0.0
    %52 = vmatpush1.msra.mxu0 %v29
    %53 = vmatprep.subr.mxu0 0.0
    %54 = vmatpush1.msra.mxu0 %v30
    %55 = vmatprep.subr.mxu0 0.0
    %56 = vmatpush1.msra.mxu0 0.0
    %57 = vmatprep.subr.mxu0 0.0
    %58 = vmatpush1.msra.mxu0 0.0
    %59 = vmatprep.subr.mxu0 0.0
    %60 = vmatpush1.msra.mxu0 0.0
    %61 = vmatprep.subr.mxu0 0.0
    %62 = vmatpush1.msra.mxu0 0.0
    %63 = vmatprep.subr.mxu0 0.0
    %64 = vmatpush1.msra.mxu0 0.0
    %65 = vmatprep.subr.mxu0 0.0
    %66 = vmatpush1.msra.mxu0 0.0
    %67 = vmatprep.subr.mxu0 0.0
    %68 = vmatpush1.msra.mxu0 0.0
    %69 = vmatprep.subr.mxu0 0.0
    %70 = vmatpush1.msra.mxu0 0.0
    %71 = vmatprep.subr.mxu0 0.0
    %72 = vmatpush1.msra.mxu0 0.0
    %73 = vmatprep.subr.mxu0 0.0
    %74 = vmatpush1.msra.mxu0 0.0
    %75 = vmatprep.subr.mxu0 0.0
    %76 = vmatpush1.msra.mxu0 0.0
    %77 = vmatprep.subr.mxu0 0.0
    %78 = vmatpush1.msra.mxu0 0.0
    %79 = vmatprep.subr.mxu0 0.0
    %80 = vmatpush1.msra.mxu0 0.0
    %81 = vmatprep.subr.mxu0 0.0
    %82 = vmatpush1.msra.mxu0 0.0
    %83 = vmatprep.subr.mxu0 0.0
    %84 = vmatpush1.msra.mxu0 0.0
    %85 = vmatprep.subr.mxu0 0.0
    %86 = vmatpush1.msra.mxu0 0.0
    %87 = vmatprep.subr.mxu0 0.0
    %88 = vmatpush1.msra.mxu0 0.0
    %89 = vmatprep.subr.mxu0 0.0
    %90 = vmatpush1.msra.mxu0 0.0
    %91 = vmatprep.subr.mxu0 0.0
    %92 = vmatpush1.msra.mxu0 0.0
    %93 = vmatprep.subr.mxu0 0.0
    %94 = vmatpush1.msra.mxu0 0.0
    %95 = vmatprep.subr.mxu0 0.0
    %96 = vmatpush1.msra.mxu0 0.0
    %97 = vmatprep.subr.mxu0 0.0
    %98 = vmatpush1.msra.mxu0 0.0
    %99 = vmatprep.subr.mxu0 0.0
    %100 = vmatpush1.msra.mxu0 0.0
    %101 = vmatprep.subr.mxu0 0.0
    %102 = vmatpush1.msra.mxu0 0.0
    %103 = vmatprep.subr.mxu0 0.0
    %104 = vmatpush1.msra.mxu0 0.0
    %105 = vmatprep.subr.mxu0 0.0
    %106 = vmatpush1.msra.mxu0 0.0
    %107 = vmatprep.subr.mxu0 0.0
    %108 = vmatpush1.msra.mxu0 0.0
    %109 = vmatprep.subr.mxu0 0.0
    %110 = vmatpush1.msra.mxu0 0.0
    %111 = vmatprep.subr.mxu0 0.0
    %112 = vmatpush1.msra.mxu0 0.0
    %113 = vmatprep.subr.mxu0 0.0
    %114 = vmatpush1.msra.mxu0 0.0
    %115 = vmatprep.mubr.f32.mxu0 0.0
    %116 = vmatmul.mubr.f32.gmra.mrb[0].mxu0 %v49
    %v117 = vpop.f32.mrb[0].mxu0
    %v118 = vadd.f32 %v46, %v117
    %v119 = vpop.f32.mrb[0].mxu0
    %120 = vdwg.mxu0
    %v121 = vlaneseq
    %v122 = vand.u32 %v121, 127
    %v123 = vld [vmem:[%s1] sm:$0xff]
    %v124 = vld [vmem:[%s1 + $0x8] sm:$0xff]
    %v125 = vld [vmem:[%s1 + $0x10] sm:$0xff]
    %v126 = vld [vmem:[%s1 + $0x18] sm:$0xff]
    %v127 = vld [vmem:[%s1 + $0x20] sm:$0xff]
    %v128 = vld [vmem:[%s1 + $0x28] sm:$0xff]
    %v129 = vld [vmem:[%s1 + $0x30] sm:$0xff]
    %130 = vset.pattern.permute.xlu0 0
    %131 = vperm.xlu0 %130, %v123
    %v132 = vpop.permute.xlu0 %131
    %133 = vset.pattern.permute.xlu0 0
    %134 = vperm.xlu0 %133, %v124
    %v135 = vpop.permute.xlu0 %134
    %136 = vset.pattern.permute.xlu0 0
    %137 = vperm.xlu0 %136, %v125
    %v138 = vpop.permute.xlu0 %137
    %139 = vset.pattern.permute.xlu0 0
    %140 = vperm.xlu0 %139, %v126
    %v141 = vpop.permute.xlu0 %140
    %142 = vset.pattern.permute.xlu0 0
    %143 = vperm.xlu0 %142, %v127
    %v144 = vpop.permute.xlu0 %143
    %145 = vset.pattern.permute.xlu0 0
    %146 = vperm.xlu0 %145, %v128
    %v147 = vpop.permute.xlu0 %146
    %148 = vset.pattern.permute.xlu0 0
    %149 = vperm.xlu0 %148, %v129
    %v150 = vpop.permute.xlu0 %149
    %vm151 = vcmp.eq.s32.totalorder %v122, %v132
    %vm152 = vcmp.eq.s32.totalorder %v122, %v135
    %vm153 = vcmp.eq.s32.totalorder %v122, %v138
    %vm154 = vcmp.eq.s32.totalorder %v122, %v141
    %vm155 = vcmp.eq.s32.totalorder %v122, %v144
    %vm156 = vcmp.eq.s32.totalorder %v122, %v147
    %vm157 = vcmp.eq.s32.totalorder %v122, %v150
    %v158 = vsel %vm151, 1, 0
    %v159 = vsel %vm152, 1, 0
    %v160 = vsel %vm153, 1, 0
    %v161 = vsel %vm154, 1, 0
    %v162 = vsel %vm155, 1, 0
    %v163 = vsel %vm156, 1, 0
    %v164 = vsel %vm157, 1, 0
    %v165 = vcvt.s32.f32 %v158
    %v166 = vcvt.s32.f32 %v159
    %v167 = vcvt.s32.f32 %v160
    %v168 = vcvt.s32.f32 %v161
    %v169 = vcvt.s32.f32 %v162
    %v170 = vcvt.s32.f32 %v163
    %v171 = vcvt.s32.f32 %v164
    %vm172 = vcmask 261120
    %v174 = vsel %vm172, %v165, 0
    %v177 = vsel %vm172, %v166, 0
    %v180 = vsel %vm172, %v167, 0
    %v183 = vsel %vm172, %v168, 0
    %v186 = vsel %vm172, %v169, 0
    %v189 = vsel %vm172, %v170, 0
    %v192 = vsel %vm172, %v171, 0
    %194 = vmatprep.subr.mxu0 0.0
    %195 = vmatpush1.msra.mxu0 %v23
    %196 = vmatprep.subr.mxu0 0.0
    %197 = vmatpush1.msra.mxu0 %v24
    %198 = vmatprep.subr.mxu0 0.0
    %199 = vmatpush1.msra.mxu0 %v25
    %200 = vmatprep.subr.mxu0 0.0
    %201 = vmatpush1.msra.mxu0 %v26
    %202 = vmatprep.subr.mxu0 0.0
    %203 = vmatpush1.msra.mxu0 0.0
    %204 = vmatprep.subr.mxu0 0.0
    %205 = vmatpush1.msra.mxu0 0.0
    %206 = vmatprep.subr.mxu0 0.0
    %207 = vmatpush1.msra.mxu0 0.0
    %208 = vmatprep.subr.mxu0 0.0
    %209 = vmatpush1.msra.mxu0 0.0
    %210 = vmatprep.subr.mxu0 0.0
    %211 = vmatpush1.msra.mxu0 0.0
    %212 = vmatprep.subr.mxu0 0.0
    %213 = vmatpush1.msra.mxu0 0.0
    %214 = vmatprep.subr.mxu0 0.0
    %215 = vmatpush1.msra.mxu0 0.0
    %216 = vmatprep.subr.mxu0 0.0
    %217 = vmatpush1.msra.mxu0 0.0
    %218 = vmatprep.subr.mxu0 0.0
    %219 = vmatpush1.msra.mxu0 0.0
    %220 = vmatprep.subr.mxu0 0.0
    %221 = vmatpush1.msra.mxu0 0.0
    %222 = vmatprep.subr.mxu0 0.0
    %223 = vmatpush1.msra.mxu0 0.0
    %224 = vmatprep.subr.mxu0 0.0
    %225 = vmatpush1.msra.mxu0 0.0
    %226 = vmatprep.subr.mxu0 0.0
    %227 = vmatpush1.msra.mxu0 0.0
    %228 = vmatprep.subr.mxu0 0.0
    %229 = vmatpush1.msra.mxu0 0.0
    %230 = vmatprep.subr.mxu0 0.0
    %231 = vmatpush1.msra.mxu0 0.0
    %232 = vmatprep.subr.mxu0 0.0
    %233 = vmatpush1.msra.mxu0 0.0
    %234 = vmatprep.subr.mxu0 0.0
    %235 = vmatpush1.msra.mxu0 0.0
    %236 = vmatprep.subr.mxu0 0.0
    %237 = vmatpush1.msra.mxu0 0.0
    %238 = vmatprep.subr.mxu0 0.0
    %239 = vmatpush1.msra.mxu0 0.0
    %240 = vmatprep.subr.mxu0 0.0
    %241 = vmatpush1.msra.mxu0 0.0
    %242 = vmatprep.subr.mxu0 0.0
    %243 = vmatpush1.msra.mxu0 0.0
    %244 = vmatprep.subr.mxu0 0.0
    %245 = vmatpush1.msra.mxu0 0.0
    %246 = vmatprep.subr.mxu0 0.0
    %247 = vmatpush1.msra.mxu0 0.0
    %248 = vmatprep.subr.mxu0 0.0
    %249 = vmatpush1.msra.mxu0 0.0
    %250 = vmatprep.subr.mxu0 0.0
    %251 = vmatpush1.msra.mxu0 0.0
    %252 = vmatprep.subr.mxu0 0.0
    %253 = vmatpush1.msra.mxu0 0.0
    %254 = vmatprep.subr.mxu0 0.0
    %255 = vmatpush1.msra.mxu0 0.0
    %256 = vmatprep.subr.mxu0 0.0
    %257 = vmatpush1.msra.mxu0 0.0
    %258 = vmatprep.mubr.f32.mxu0 0.0
    %259 = vmatmul.mubr.f32.gmra.mrb[0].mxu0 %v174
    %v260 = vpop.f32.mrb[0].mxu0
    %v261 = vadd.f32 0.0, %v260
    %v262 = vpop.f32.mrb[0].mxu0
    %263 = vmatprep.mubr.f32.mxu0 0.0
    %264 = vmatmul.mubr.f32.gmra.mrb[0].mxu0 %v177
    %v265 = vpop.f32.mrb[0].mxu0
    %v266 = vadd.f32 0.0, %v265
    %v267 = vpop.f32.mrb[0].mxu0
    %268 = vmatprep.mubr.f32.mxu0 0.0
    %269 = vmatmul.mubr.f32.gmra.mrb[0].mxu0 %v180
    %v270 = vpop.f32.mrb[0].mxu0
    %v271 = vadd.f32 0.0, %v270
    %v272 = vpop.f32.mrb[0].mxu0
    %273 = vmatprep.mubr.f32.mxu0 0.0
    %274 = vmatmul.mubr.f32.gmra.mrb[0].mxu0 %v183
    %v275 = vpop.f32.mrb[0].mxu0
    %v276 = vadd.f32 0.0, %v275
    %v277 = vpop.f32.mrb[0].mxu0
    %278 = vmatprep.mubr.f32.mxu0 0.0
    %279 = vmatmul.mubr.f32.gmra.mrb[0].mxu0 %v186
    %v280 = vpop.f32.mrb[0].mxu0
    %v281 = vadd.f32 0.0, %v280
    %v282 = vpop.f32.mrb[0].mxu0
    %283 = vmatprep.mubr.f32.mxu0 0.0
    %284 = vmatmul.mubr.f32.gmra.mrb[0].mxu0 %v189
    %v285 = vpop.f32.mrb[0].mxu0
    %v286 = vadd.f32 0.0, %v285
    %v287 = vpop.f32.mrb[0].mxu0
    %288 = vmatprep.mubr.f32.mxu0 0.0
    %289 = vmatmul.mubr.f32.gmra.mrb[0].mxu0 %v192
    %v290 = vpop.f32.mrb[0].mxu0
    %v291 = vadd.f32 0.0, %v290
    %v292 = vpop.f32.mrb[0].mxu0
    %293 = vdwg.mxu0
    %v294 = vlaneseq
    %v295 = vshrl.u32 %v294, 7
    %v296 = vsub.s32 0, %v295
    %v297 = vrot.slane %v40, %v296
    %298 = vmatprep.subr.mxu0 0.0
    %299 = vmatpush1.msra.mxu0 %v27
    %300 = vmatprep.subr.mxu0 0.0
    %301 = vmatpush1.msra.mxu0 %v28
    %302 = vmatprep.subr.mxu0 0.0
    %303 = vmatpush1.msra.mxu0 0.0
    %304 = vmatprep.subr.mxu0 0.0
    %305 = vmatpush1.msra.mxu0 0.0
    %306 = vmatprep.subr.mxu0 0.0
    %307 = vmatpush1.msra.mxu0 0.0
    %308 = vmatprep.subr.mxu0 0.0
    %309 = vmatpush1.msra.mxu0 0.0
    %310 = vmatprep.subr.mxu0 0.0
    %311 = vmatpush1.msra.mxu0 0.0
    %312 = vmatprep.subr.mxu0 0.0
    %313 = vmatpush1.msra.mxu0 0.0
    %314 = vmatprep.subr.mxu0 0.0
    %315 = vmatpush1.msra.mxu0 0.0
    %316 = vmatprep.subr.mxu0 0.0
    %317 = vmatpush1.msra.mxu0 0.0
    %318 = vmatprep.subr.mxu0 0.0
    %319 = vmatpush1.msra.mxu0 0.0
    %320 = vmatprep.subr.mxu0 0.0
    %321 = vmatpush1.msra.mxu0 0.0
    %322 = vmatprep.subr.mxu0 0.0
    %323 = vmatpush1.msra.mxu0 0.0
    %324 = vmatprep.subr.mxu0 0.0
    %325 = vmatpush1.msra.mxu0 0.0
    %326 = vmatprep.subr.mxu0 0.0
    %327 = vmatpush1.msra.mxu0 0.0
    %328 = vmatprep.subr.mxu0 0.0
    %329 = vmatpush1.msra.mxu0 0.0
    %330 = vmatprep.subr.mxu0 0.0
    %331 = vmatpush1.msra.mxu0 0.0
    %332 = vmatprep.subr.mxu0 0.0
    %333 = vmatpush1.msra.mxu0 0.0
    %334 = vmatprep.subr.mxu0 0.0
    %335 = vmatpush1.msra.mxu0 0.0
    %336 = vmatprep.subr.mxu0 0.0
    %337 = vmatpush1.msra.mxu0 0.0
    %338 = vmatprep.subr.mxu0 0.0
    %339 = vmatpush1.msra.mxu0 0.0
    %340 = vmatprep.subr.mxu0 0.0
    %341 = vmatpush1.msra.mxu0 0.0
    %342 = vmatprep.subr.mxu0 0.0
    %343 = vmatpush1.msra.mxu0 0.0
    %344 = vmatprep.subr.mxu0 0.0
    %345 = vmatpush1.msra.mxu0 0.0
    %346 = vmatprep.subr.mxu0 0.0
    %347 = vmatpush1.msra.mxu0 0.0
    %348 = vmatprep.subr.mxu0 0.0
    %349 = vmatpush1.msra.mxu0 0.0
    %350 = vmatprep.subr.mxu0 0.0
    %351 = vmatpush1.msra.mxu0 0.0
    %352 = vmatprep.subr.mxu0 0.0
    %353 = vmatpush1.msra.mxu0 0.0
    %354 = vmatprep.subr.mxu0 0.0
    %355 = vmatpush1.msra.mxu0 0.0
    %356 = vmatprep.subr.mxu0 0.0
    %357 = vmatpush1.msra.mxu0 0.0
    %358 = vmatprep.subr.mxu0 0.0
    %359 = vmatpush1.msra.mxu0 0.0
    %360 = vmatprep.subr.mxu0 0.0
    %361 = vmatpush1.msra.mxu0 0.0
    %362 = vmatprep.mubr.f32.mxu0 0.0
    %363 = vmatmul.mubr.f32.gmra.mrb[0].mxu0 %v49
    %v364 = vpop.f32.mrb[0].mxu0
    %v365 = vadd.f32 %v297, %v364
    %v366 = vpop.f32.mrb[0].mxu0
    %367 = vdwg.mxu0
    %v368 = vadd.f32 %v261, %v365
    %v369 = vadd.f32 %v266, %v365
    %v370 = vadd.f32 %v271, %v365
    %v371 = vadd.f32 %v276, %v365
    %v372 = vadd.f32 %v281, %v365
    %v373 = vadd.f32 %v286, %v365
    %v374 = vadd.f32 %v291, %v365
    %v375 = vld [vmem:[%s2] sm:$0xff]
    %v376 = vld [vmem:[%s2 + $0x8] sm:$0xff]
    %v377 = vld [vmem:[%s2 + $0x10] sm:$0xff]
    %v378 = vld [vmem:[%s2 + $0x18] sm:$0xff]
    %v379 = vld [vmem:[%s2 + $0x20] sm:$0xff]
    %v380 = vld [vmem:[%s2 + $0x28] sm:$0xff]
    %v381 = vld [vmem:[%s2 + $0x30] sm:$0xff]
    %v382 = vpack.c.bf16 %v32, %v31
    %v383 = vpack.c.bf16 %v34, %v33
    %v384 = vpack.c.bf16 %v118, %v118
    %v385 = vlaneseq
    %v386 = vshrl.u32 %v385, 7
    %v387 = vsub.s32 0, %v386
    %v388 = vrot.slane %v41, %v387
    %v390 = vsel %vm172, %v384, 0
    %392 = vmatprep.subr.bf16.mxu0 0
    %393 = vmatpush1.bf16.msra.mxu0 %v382
    %394 = vmatprep.subr.bf16.mxu0 0
    %395 = vmatpush1.bf16.msra.mxu0 %v383
    %396 = vmatprep.subr.bf16.mxu0 0
    %397 = vmatpush1.bf16.msra.mxu0 0
    %398 = vmatprep.subr.bf16.mxu0 0
    %399 = vmatpush1.bf16.msra.mxu0 0
    %400 = vmatprep.subr.bf16.mxu0 0
    %401 = vmatpush1.bf16.msra.mxu0 0
    %402 = vmatprep.subr.bf16.mxu0 0
    %403 = vmatpush1.bf16.msra.mxu0 0
    %404 = vmatprep.subr.bf16.mxu0 0
    %405 = vmatpush1.bf16.msra.mxu0 0
    %406 = vmatprep.subr.bf16.mxu0 0
    %407 = vmatpush1.bf16.msra.mxu0 0
    %408 = vmatprep.subr.bf16.mxu0 0
    %409 = vmatpush1.bf16.msra.mxu0 0
    %410 = vmatprep.subr.bf16.mxu0 0
    %411 = vmatpush1.bf16.msra.mxu0 0
    %412 = vmatprep.subr.bf16.mxu0 0
    %413 = vmatpush1.bf16.msra.mxu0 0
    %414 = vmatprep.subr.bf16.mxu0 0
    %415 = vmatpush1.bf16.msra.mxu0 0
    %416 = vmatprep.subr.bf16.mxu0 0
    %417 = vmatpush1.bf16.msra.mxu0 0
    %418 = vmatprep.subr.bf16.mxu0 0
    %419 = vmatpush1.bf16.msra.mxu0 0
    %420 = vmatprep.subr.bf16.mxu0 0
    %421 = vmatpush1.bf16.msra.mxu0 0
    %422 = vmatprep.subr.bf16.mxu0 0
    %423 = vmatpush1.bf16.msra.mxu0 0
    %424 = vmatprep.mubr.bf16.mxu0 0
    %425 = vmatmul.mubr.bf16.gmra.mrb[0].mxu0 %v390
    %v426 = vpop.f32.mrb[0].mxu0
    %v427 = vadd.f32 %v388, %v426
    %v428 = vpop.f32.mrb[0].mxu0
    %v429 = vpop.f32.mrb[0].mxu0
    %v430 = vpop.f32.mrb[0].mxu0
    %431 = vdwg.mxu0
    %v432 = vadd.f32 %v368, %v427
    %v433 = vxor.u32 %v432, 2147483648
    %v434 = vmul.f32 %v433, 1.442695
    %v435 = vpow.pop %v434
    %v436 = vadd.f32 %v435, 1.0
    %v437 = vrcp.pop %v436
    %v438 = vmul.f32 1.0, %v437
    %440 = vrot.lane.b32.xlu0 %v427, 64
    %v441 = vpop.permute.xlu0 %440
    %v443 = vmul.f32 %v438, %v441
    %445 = vrot.lane.b32.xlu0 %v443, 64
    %v446 = vpop.permute.xlu0 %445
    %v448 = vadd.f32 %v368, %v446
    %v449 = vtanh.pop %v448
    %v450 = vsub.f32 1.0, %v438
    %452 = vrot.lane.b32.xlu0 %v449, 96
    %v453 = vpop.permute.xlu0 %452
    %v455 = vmul.f32 %v450, %v453
    %457 = vrot.lane.b32.xlu0 %v118, 32
    %v458 = vpop.permute.xlu0 %457
    %v460 = vmul.f32 %v438, %v458
    %v461 = vadd.f32 %v455, %v460
    %463 = vset.pattern.permute.xlu0 0
    %464 = vperm.xlu0 %463, %v375
    %v465 = vpop.permute.xlu0 %464
    %v467 = vmul.f32 %v465, %v461
    %v468 = vsub.f32 1.0, %v375
    %470 = vset.pattern.permute.xlu0 0
    %471 = vperm.xlu0 %470, %v468
    %v472 = vpop.permute.xlu0 %471
    %v474 = vmul.f32 %v472, %v118
    %476 = vrot.lane.b32.xlu0 %v474, 32
    %v477 = vpop.permute.xlu0 %476
    %v479 = vadd.f32 %v467, %v477
    %481 = vrot.lane.b32.xlu0 %v479, 96
    %v482 = vpop.permute.xlu0 %481
    %484 = vst.msk [vmem:[#allocation2] sm:$0xff] %vm172, %v482
    %v485 = vpack.c.bf16 %v479, %v479
    %487 = vrot.lane.b32.xlu0 %v485, 96
    %v488 = vpop.permute.xlu0 %487
    %v490 = vsel %vm172, %v488, 0
    %492 = vmatprep.subr.bf16.mxu0 0
    %493 = vmatpush1.bf16.msra.mxu0 %v382
    %494 = vmatprep.subr.bf16.mxu0 0
    %495 = vmatpush1.bf16.msra.mxu0 %v383
    %496 = vmatprep.subr.bf16.mxu0 0
    %497 = vmatpush1.bf16.msra.mxu0 0
    %498 = vmatprep.subr.bf16.mxu0 0
    %499 = vmatpush1.bf16.msra.mxu0 0
    %500 = vmatprep.subr.bf16.mxu0 0
    %501 = vmatpush1.bf16.msra.mxu0 0
    %502 = vmatprep.subr.bf16.mxu0 0
    %503 = vmatpush1.bf16.msra.mxu0 0
    %504 = vmatprep.subr.bf16.mxu0 0
    %505 = vmatpush1.bf16.msra.mxu0 0
    %506 = vmatprep.subr.bf16.mxu0 0
    %507 = vmatpush1.bf16.msra.mxu0 0
    %508 = vmatprep.subr.bf16.mxu0 0
    %509 = vmatpush1.bf16.msra.mxu0 0
    %510 = vmatprep.subr.bf16.mxu0 0
    %511 = vmatpush1.bf16.msra.mxu0 0
    %512 = vmatprep.subr.bf16.mxu0 0
    %513 = vmatpush1.bf16.msra.mxu0 0
    %514 = vmatprep.subr.bf16.mxu0 0
    %515 = vmatpush1.bf16.msra.mxu0 0
    %516 = vmatprep.subr.bf16.mxu0 0
    %517 = vmatpush1.bf16.msra.mxu0 0
    %518 = vmatprep.subr.bf16.mxu0 0
    %519 = vmatpush1.bf16.msra.mxu0 0
    %520 = vmatprep.subr.bf16.mxu0 0
    %521 = vmatpush1.bf16.msra.mxu0 0
    %522 = vmatprep.subr.bf16.mxu0 0
    %523 = vmatpush1.bf16.msra.mxu0 0
    %524 = vmatprep.mubr.bf16.mxu0 0
    %525 = vmatmul.mubr.bf16.gmra.mrb[0].mxu0 %v490
    %v526 = vpop.f32.mrb[0].mxu0
    %v527 = vadd.f32 %v388, %v526
    %v528 = vpop.f32.mrb[0].mxu0
    %v529 = vpop.f32.mrb[0].mxu0
    %v530 = vpop.f32.mrb[0].mxu0
    %531 = vdwg.mxu0
    %v532 = vadd.f32 %v369, %v527
    %v533 = vxor.u32 %v532, 2147483648
    %v534 = vmul.f32 %v533, 1.442695
    %v535 = vpow.pop %v534
    %v536 = vadd.f32 %v535, 1.0
    %v537 = vrcp.pop %v536
    %v538 = vmul.f32 1.0, %v537
    %540 = vrot.lane.b32.xlu0 %v527, 64
    %v541 = vpop.permute.xlu0 %540
    %v543 = vmul.f32 %v538, %v541
    %545 = vrot.lane.b32.xlu0 %v543, 64
    %v546 = vpop.permute.xlu0 %545
    %v548 = vadd.f32 %v369, %v546
    %v549 = vtanh.pop %v548
    %v550 = vsub.f32 1.0, %v538
    %552 = vrot.lane.b32.xlu0 %v549, 96
    %v553 = vpop.permute.xlu0 %552
    %v555 = vmul.f32 %v550, %v553
    %v556 = vmul.f32 %v538, %v479
    %v557 = vadd.f32 %v555, %v556
    %559 = vset.pattern.permute.xlu0 0
    %560 = vperm.xlu0 %559, %v376
    %v561 = vpop.permute.xlu0 %560
    %v563 = vmul.f32 %v561, %v557
    %v564 = vsub.f32 1.0, %v376
    %566 = vset.pattern.permute.xlu0 0
    %567 = vperm.xlu0 %566, %v564
    %v568 = vpop.permute.xlu0 %567
    %v570 = vmul.f32 %v568, %v479
    %v571 = vadd.f32 %v563, %v570
    %573 = vrot.lane.b32.xlu0 %v571, 96
    %v574 = vpop.permute.xlu0 %573
    %s576 = scalar_lea.vmem [#allocation2], 8
    %577 = vst.msk [vmem:[%s576] sm:$0xff] %vm172, %v574
    %v578 = vpack.c.bf16 %v571, %v571
    %580 = vrot.lane.b32.xlu0 %v578, 96
    %v581 = vpop.permute.xlu0 %580
    %v583 = vsel %vm172, %v581, 0
    %585 = vmatprep.subr.bf16.mxu0 0
    %586 = vmatpush1.bf16.msra.mxu0 %v382
    %587 = vmatprep.subr.bf16.mxu0 0
    %588 = vmatpush1.bf16.msra.mxu0 %v383
    %589 = vmatprep.subr.bf16.mxu0 0
    %590 = vmatpush1.bf16.msra.mxu0 0
    %591 = vmatprep.subr.bf16.mxu0 0
    %592 = vmatpush1.bf16.msra.mxu0 0
    %593 = vmatprep.subr.bf16.mxu0 0
    %594 = vmatpush1.bf16.msra.mxu0 0
    %595 = vmatprep.subr.bf16.mxu0 0
    %596 = vmatpush1.bf16.msra.mxu0 0
    %597 = vmatprep.subr.bf16.mxu0 0
    %598 = vmatpush1.bf16.msra.mxu0 0
    %599 = vmatprep.subr.bf16.mxu0 0
    %600 = vmatpush1.bf16.msra.mxu0 0
    %601 = vmatprep.subr.bf16.mxu0 0
    %602 = vmatpush1.bf16.msra.mxu0 0
    %603 = vmatprep.subr.bf16.mxu0 0
    %604 = vmatpush1.bf16.msra.mxu0 0
    %605 = vmatprep.subr.bf16.mxu0 0
    %606 = vmatpush1.bf16.msra.mxu0 0
    %607 = vmatprep.subr.bf16.mxu0 0
    %608 = vmatpush1.bf16.msra.mxu0 0
    %609 = vmatprep.subr.bf16.mxu0 0
    %610 = vmatpush1.bf16.msra.mxu0 0
    %611 = vmatprep.subr.bf16.mxu0 0
    %612 = vmatpush1.bf16.msra.mxu0 0
    %613 = vmatprep.subr.bf16.mxu0 0
    %614 = vmatpush1.bf16.msra.mxu0 0
    %615 = vmatprep.subr.bf16.mxu0 0
    %616 = vmatpush1.bf16.msra.mxu0 0
    %617 = vmatprep.mubr.bf16.mxu0 0
    %618 = vmatmul.mubr.bf16.gmra.mrb[0].mxu0 %v583
    %v619 = vpop.f32.mrb[0].mxu0
    %v620 = vadd.f32 %v388, %v619
    %v621 = vpop.f32.mrb[0].mxu0
    %v622 = vpop.f32.mrb[0].mxu0
    %v623 = vpop.f32.mrb[0].mxu0
    %624 = vdwg.mxu0
    %v625 = vadd.f32 %v370, %v620
    %v626 = vxor.u32 %v625, 2147483648
    %v627 = vmul.f32 %v626, 1.442695
    %v628 = vpow.pop %v627
    %v629 = vadd.f32 %v628, 1.0
    %v630 = vrcp.pop %v629
    %v631 = vmul.f32 1.0, %v630
    %633 = vrot.lane.b32.xlu0 %v620, 64
    %v634 = vpop.permute.xlu0 %633
    %v636 = vmul.f32 %v631, %v634
    %638 = vrot.lane.b32.xlu0 %v636, 64
    %v639 = vpop.permute.xlu0 %638
    %v641 = vadd.f32 %v370, %v639
    %v642 = vtanh.pop %v641
    %v643 = vsub.f32 1.0, %v631
    %645 = vrot.lane.b32.xlu0 %v642, 96
    %v646 = vpop.permute.xlu0 %645
    %v648 = vmul.f32 %v643, %v646
    %v649 = vmul.f32 %v631, %v571
    %v650 = vadd.f32 %v648, %v649
    %652 = vset.pattern.permute.xlu0 0
    %653 = vperm.xlu0 %652, %v377
    %v654 = vpop.permute.xlu0 %653
    %v656 = vmul.f32 %v654, %v650
    %v657 = vsub.f32 1.0, %v377
    %659 = vset.pattern.permute.xlu0 0
    %660 = vperm.xlu0 %659, %v657
    %v661 = vpop.permute.xlu0 %660
    %v663 = vmul.f32 %v661, %v571
    %v664 = vadd.f32 %v656, %v663
    %666 = vrot.lane.b32.xlu0 %v664, 96
    %v667 = vpop.permute.xlu0 %666
    %s669 = scalar_lea.vmem [#allocation2], 16
    %670 = vst.msk [vmem:[%s669] sm:$0xff] %vm172, %v667
    %v671 = vpack.c.bf16 %v664, %v664
    %673 = vrot.lane.b32.xlu0 %v671, 96
    %v674 = vpop.permute.xlu0 %673
    %v676 = vsel %vm172, %v674, 0
    %678 = vmatprep.subr.bf16.mxu0 0
    %679 = vmatpush1.bf16.msra.mxu0 %v382
    %680 = vmatprep.subr.bf16.mxu0 0
    %681 = vmatpush1.bf16.msra.mxu0 %v383
    %682 = vmatprep.subr.bf16.mxu0 0
    %683 = vmatpush1.bf16.msra.mxu0 0
    %684 = vmatprep.subr.bf16.mxu0 0
    %685 = vmatpush1.bf16.msra.mxu0 0
    %686 = vmatprep.subr.bf16.mxu0 0
    %687 = vmatpush1.bf16.msra.mxu0 0
    %688 = vmatprep.subr.bf16.mxu0 0
    %689 = vmatpush1.bf16.msra.mxu0 0
    %690 = vmatprep.subr.bf16.mxu0 0
    %691 = vmatpush1.bf16.msra.mxu0 0
    %692 = vmatprep.subr.bf16.mxu0 0
    %693 = vmatpush1.bf16.msra.mxu0 0
    %694 = vmatprep.subr.bf16.mxu0 0
    %695 = vmatpush1.bf16.msra.mxu0 0
    %696 = vmatprep.subr.bf16.mxu0 0
    %697 = vmatpush1.bf16.msra.mxu0 0
    %698 = vmatprep.subr.bf16.mxu0 0
    %699 = vmatpush1.bf16.msra.mxu0 0
    %700 = vmatprep.subr.bf16.mxu0 0
    %701 = vmatpush1.bf16.msra.mxu0 0
    %702 = vmatprep.subr.bf16.mxu0 0
    %703 = vmatpush1.bf16.msra.mxu0 0
    %704 = vmatprep.subr.bf16.mxu0 0
    %705 = vmatpush1.bf16.msra.mxu0 0
    %706 = vmatprep.subr.bf16.mxu0 0
    %707 = vmatpush1.bf16.msra.mxu0 0
    %708 = vmatprep.subr.bf16.mxu0 0
    %709 = vmatpush1.bf16.msra.mxu0 0
    %710 = vmatprep.mubr.bf16.mxu0 0
    %711 = vmatmul.mubr.bf16.gmra.mrb[0].mxu0 %v676
    %v712 = vpop.f32.mrb[0].mxu0
    %v713 = vadd.f32 %v388, %v712
    %v714 = vpop.f32.mrb[0].mxu0
    %v715 = vpop.f32.mrb[0].mxu0
    %v716 = vpop.f32.mrb[0].mxu0
    %717 = vdwg.mxu0
    %v718 = vadd.f32 %v371, %v713
    %v719 = vxor.u32 %v718, 2147483648
    %v720 = vmul.f32 %v719, 1.442695
    %v721 = vpow.pop %v720
    %v722 = vadd.f32 %v721, 1.0
    %v723 = vrcp.pop %v722
    %v724 = vmul.f32 1.0, %v723
    %726 = vrot.lane.b32.xlu0 %v713, 64
    %v727 = vpop.permute.xlu0 %726
    %v729 = vmul.f32 %v724, %v727
    %731 = vrot.lane.b32.xlu0 %v729, 64
    %v732 = vpop.permute.xlu0 %731
    %v734 = vadd.f32 %v371, %v732
    %v735 = vtanh.pop %v734
    %v736 = vsub.f32 1.0, %v724
    %738 = vrot.lane.b32.xlu0 %v735, 96
    %v739 = vpop.permute.xlu0 %738
    %v741 = vmul.f32 %v736, %v739
    %v742 = vmul.f32 %v724, %v664
    %v743 = vadd.f32 %v741, %v742
    %745 = vset.pattern.permute.xlu0 0
    %746 = vperm.xlu0 %745, %v378
    %v747 = vpop.permute.xlu0 %746
    %v749 = vmul.f32 %v747, %v743
    %v750 = vsub.f32 1.0, %v378
    %752 = vset.pattern.permute.xlu0 0
    %753 = vperm.xlu0 %752, %v750
    %v754 = vpop.permute.xlu0 %753
    %v756 = vmul.f32 %v754, %v664
    %v757 = vadd.f32 %v749, %v756
    %759 = vrot.lane.b32.xlu0 %v757, 96
    %v760 = vpop.permute.xlu0 %759
    %s762 = scalar_lea.vmem [#allocation2], 24
    %763 = vst.msk [vmem:[%s762] sm:$0xff] %vm172, %v760
    %v764 = vpack.c.bf16 %v757, %v757
    %766 = vrot.lane.b32.xlu0 %v764, 96
    %v767 = vpop.permute.xlu0 %766
    %v769 = vsel %vm172, %v767, 0
    %771 = vmatprep.subr.bf16.mxu0 0
    %772 = vmatpush1.bf16.msra.mxu0 %v382
    %773 = vmatprep.subr.bf16.mxu0 0
    %774 = vmatpush1.bf16.msra.mxu0 %v383
    %775 = vmatprep.subr.bf16.mxu0 0
    %776 = vmatpush1.bf16.msra.mxu0 0
    %777 = vmatprep.subr.bf16.mxu0 0
    %778 = vmatpush1.bf16.msra.mxu0 0
    %779 = vmatprep.subr.bf16.mxu0 0
    %780 = vmatpush1.bf16.msra.mxu0 0
    %781 = vmatprep.subr.bf16.mxu0 0
    %782 = vmatpush1.bf16.msra.mxu0 0
    %783 = vmatprep.subr.bf16.mxu0 0
    %784 = vmatpush1.bf16.msra.mxu0 0
    %785 = vmatprep.subr.bf16.mxu0 0
    %786 = vmatpush1.bf16.msra.mxu0 0
    %787 = vmatprep.subr.bf16.mxu0 0
    %788 = vmatpush1.bf16.msra.mxu0 0
    %789 = vmatprep.subr.bf16.mxu0 0
    %790 = vmatpush1.bf16.msra.mxu0 0
    %791 = vmatprep.subr.bf16.mxu0 0
    %792 = vmatpush1.bf16.msra.mxu0 0
    %793 = vmatprep.subr.bf16.mxu0 0
    %794 = vmatpush1.bf16.msra.mxu0 0
    %795 = vmatprep.subr.bf16.mxu0 0
    %796 = vmatpush1.bf16.msra.mxu0 0
    %797 = vmatprep.subr.bf16.mxu0 0
    %798 = vmatpush1.bf16.msra.mxu0 0
    %799 = vmatprep.subr.bf16.mxu0 0
    %800 = vmatpush1.bf16.msra.mxu0 0
    %801 = vmatprep.subr.bf16.mxu0 0
    %802 = vmatpush1.bf16.msra.mxu0 0
    %803 = vmatprep.mubr.bf16.mxu0 0
    %804 = vmatmul.mubr.bf16.gmra.mrb[0].mxu0 %v769
    %v805 = vpop.f32.mrb[0].mxu0
    %v806 = vadd.f32 %v388, %v805
    %v807 = vpop.f32.mrb[0].mxu0
    %v808 = vpop.f32.mrb[0].mxu0
    %v809 = vpop.f32.mrb[0].mxu0
    %810 = vdwg.mxu0
    %v811 = vadd.f32 %v372, %v806
    %v812 = vxor.u32 %v811, 2147483648
    %v813 = vmul.f32 %v812, 1.442695
    %v814 = vpow.pop %v813
    %v815 = vadd.f32 %v814, 1.0
    %v816 = vrcp.pop %v815
    %v817 = vmul.f32 1.0, %v816
    %819 = vrot.lane.b32.xlu0 %v806, 64
    %v820 = vpop.permute.xlu0 %819
    %v822 = vmul.f32 %v817, %v820
    %824 = vrot.lane.b32.xlu0 %v822, 64
    %v825 = vpop.permute.xlu0 %824
    %v827 = vadd.f32 %v372, %v825
    %v828 = vtanh.pop %v827
    %v829 = vsub.f32 1.0, %v817
    %831 = vrot.lane.b32.xlu0 %v828, 96
    %v832 = vpop.permute.xlu0 %831
    %v834 = vmul.f32 %v829, %v832
    %v835 = vmul.f32 %v817, %v757
    %v836 = vadd.f32 %v834, %v835
    %838 = vset.pattern.permute.xlu0 0
    %839 = vperm.xlu0 %838, %v379
    %v840 = vpop.permute.xlu0 %839
    %v842 = vmul.f32 %v840, %v836
    %v843 = vsub.f32 1.0, %v379
    %845 = vset.pattern.permute.xlu0 0
    %846 = vperm.xlu0 %845, %v843
    %v847 = vpop.permute.xlu0 %846
    %v849 = vmul.f32 %v847, %v757
    %v850 = vadd.f32 %v842, %v849
    %852 = vrot.lane.b32.xlu0 %v850, 96
    %v853 = vpop.permute.xlu0 %852
    %s855 = scalar_lea.vmem [#allocation2], 32
    %856 = vst.msk [vmem:[%s855] sm:$0xff] %vm172, %v853
    %v857 = vpack.c.bf16 %v850, %v850
    %859 = vrot.lane.b32.xlu0 %v857, 96
    %v860 = vpop.permute.xlu0 %859
    %v862 = vsel %vm172, %v860, 0
    %864 = vmatprep.subr.bf16.mxu0 0
    %865 = vmatpush1.bf16.msra.mxu0 %v382
    %866 = vmatprep.subr.bf16.mxu0 0
    %867 = vmatpush1.bf16.msra.mxu0 %v383
    %868 = vmatprep.subr.bf16.mxu0 0
    %869 = vmatpush1.bf16.msra.mxu0 0
    %870 = vmatprep.subr.bf16.mxu0 0
    %871 = vmatpush1.bf16.msra.mxu0 0
    %872 = vmatprep.subr.bf16.mxu0 0
    %873 = vmatpush1.bf16.msra.mxu0 0
    %874 = vmatprep.subr.bf16.mxu0 0
    %875 = vmatpush1.bf16.msra.mxu0 0
    %876 = vmatprep.subr.bf16.mxu0 0
    %877 = vmatpush1.bf16.msra.mxu0 0
    %878 = vmatprep.subr.bf16.mxu0 0
    %879 = vmatpush1.bf16.msra.mxu0 0
    %880 = vmatprep.subr.bf16.mxu0 0
    %881 = vmatpush1.bf16.msra.mxu0 0
    %882 = vmatprep.subr.bf16.mxu0 0
    %883 = vmatpush1.bf16.msra.mxu0 0
    %884 = vmatprep.subr.bf16.mxu0 0
    %885 = vmatpush1.bf16.msra.mxu0 0
    %886 = vmatprep.subr.bf16.mxu0 0
    %887 = vmatpush1.bf16.msra.mxu0 0
    %888 = vmatprep.subr.bf16.mxu0 0
    %889 = vmatpush1.bf16.msra.mxu0 0
    %890 = vmatprep.subr.bf16.mxu0 0
    %891 = vmatpush1.bf16.msra.mxu0 0
    %892 = vmatprep.subr.bf16.mxu0 0
    %893 = vmatpush1.bf16.msra.mxu0 0
    %894 = vmatprep.subr.bf16.mxu0 0
    %895 = vmatpush1.bf16.msra.mxu0 0
    %896 = vmatprep.mubr.bf16.mxu0 0
    %897 = vmatmul.mubr.bf16.gmra.mrb[0].mxu0 %v862
    %v898 = vpop.f32.mrb[0].mxu0
    %v899 = vadd.f32 %v388, %v898
    %v900 = vpop.f32.mrb[0].mxu0
    %v901 = vpop.f32.mrb[0].mxu0
    %v902 = vpop.f32.mrb[0].mxu0
    %903 = vdwg.mxu0
    %v904 = vadd.f32 %v373, %v899
    %v905 = vxor.u32 %v904, 2147483648
    %v906 = vmul.f32 %v905, 1.442695
    %v907 = vpow.pop %v906
    %v908 = vadd.f32 %v907, 1.0
    %v909 = vrcp.pop %v908
    %v910 = vmul.f32 1.0, %v909
    %912 = vrot.lane.b32.xlu0 %v899, 64
    %v913 = vpop.permute.xlu0 %912
    %v915 = vmul.f32 %v910, %v913
    %917 = vrot.lane.b32.xlu0 %v915, 64
    %v918 = vpop.permute.xlu0 %917
    %v920 = vadd.f32 %v373, %v918
    %v921 = vtanh.pop %v920
    %v922 = vsub.f32 1.0, %v910
    %924 = vrot.lane.b32.xlu0 %v921, 96
    %v925 = vpop.permute.xlu0 %924
    %v927 = vmul.f32 %v922, %v925
    %v928 = vmul.f32 %v910, %v850
    %v929 = vadd.f32 %v927, %v928
    %931 = vset.pattern.permute.xlu0 0
    %932 = vperm.xlu0 %931, %v380
    %v933 = vpop.permute.xlu0 %932
    %v935 = vmul.f32 %v933, %v929
    %v936 = vsub.f32 1.0, %v380
    %938 = vset.pattern.permute.xlu0 0
    %939 = vperm.xlu0 %938, %v936
    %v940 = vpop.permute.xlu0 %939
    %v942 = vmul.f32 %v940, %v850
    %v943 = vadd.f32 %v935, %v942
    %945 = vrot.lane.b32.xlu0 %v943, 96
    %v946 = vpop.permute.xlu0 %945
    %s948 = scalar_lea.vmem [#allocation2], 40
    %949 = vst.msk [vmem:[%s948] sm:$0xff] %vm172, %v946
    %v950 = vpack.c.bf16 %v943, %v943
    %952 = vrot.lane.b32.xlu0 %v950, 96
    %v953 = vpop.permute.xlu0 %952
    %v955 = vsel %vm172, %v953, 0
    %957 = vmatprep.subr.bf16.mxu0 0
    %958 = vmatpush1.bf16.msra.mxu0 %v382
    %959 = vmatprep.subr.bf16.mxu0 0
    %960 = vmatpush1.bf16.msra.mxu0 %v383
    %961 = vmatprep.subr.bf16.mxu0 0
    %962 = vmatpush1.bf16.msra.mxu0 0
    %963 = vmatprep.subr.bf16.mxu0 0
    %964 = vmatpush1.bf16.msra.mxu0 0
    %965 = vmatprep.subr.bf16.mxu0 0
    %966 = vmatpush1.bf16.msra.mxu0 0
    %967 = vmatprep.subr.bf16.mxu0 0
    %968 = vmatpush1.bf16.msra.mxu0 0
    %969 = vmatprep.subr.bf16.mxu0 0
    %970 = vmatpush1.bf16.msra.mxu0 0
    %971 = vmatprep.subr.bf16.mxu0 0
    %972 = vmatpush1.bf16.msra.mxu0 0
    %973 = vmatprep.subr.bf16.mxu0 0
    %974 = vmatpush1.bf16.msra.mxu0 0
    %975 = vmatprep.subr.bf16.mxu0 0
    %976 = vmatpush1.bf16.msra.mxu0 0
    %977 = vmatprep.subr.bf16.mxu0 0
    %978 = vmatpush1.bf16.msra.mxu0 0
    %979 = vmatprep.subr.bf16.mxu0 0
    %980 = vmatpush1.bf16.msra.mxu0 0
    %981 = vmatprep.subr.bf16.mxu0 0
    %982 = vmatpush1.bf16.msra.mxu0 0
    %983 = vmatprep.subr.bf16.mxu0 0
    %984 = vmatpush1.bf16.msra.mxu0 0
    %985 = vmatprep.subr.bf16.mxu0 0
    %986 = vmatpush1.bf16.msra.mxu0 0
    %987 = vmatprep.subr.bf16.mxu0 0
    %988 = vmatpush1.bf16.msra.mxu0 0
    %989 = vmatprep.mubr.bf16.mxu0 0
    %990 = vmatmul.mubr.bf16.gmra.mrb[0].mxu0 %v955
    %v991 = vpop.f32.mrb[0].mxu0
    %v992 = vadd.f32 %v388, %v991
    %v993 = vpop.f32.mrb[0].mxu0
    %v994 = vpop.f32.mrb[0].mxu0
    %v995 = vpop.f32.mrb[0].mxu0
    %996 = vdwg.mxu0
    %v997 = vadd.f32 %v374, %v992
    %v998 = vxor.u32 %v997, 2147483648
    %v999 = vmul.f32 %v998, 1.442695
    %v1000 = vpow.pop %v999
    %v1001 = vadd.f32 %v1000, 1.0
    %v1002 = vrcp.pop %v1001
    %v1003 = vmul.f32 1.0, %v1002
    %1005 = vrot.lane.b32.xlu0 %v992, 64
    %v1006 = vpop.permute.xlu0 %1005
    %v1008 = vmul.f32 %v1003, %v1006
    %1010 = vrot.lane.b32.xlu0 %v1008, 64
    %v1011 = vpop.permute.xlu0 %1010
    %v1013 = vadd.f32 %v374, %v1011
    %v1014 = vtanh.pop %v1013
    %v1015 = vsub.f32 1.0, %v1003
    %1017 = vrot.lane.b32.xlu0 %v1014, 96
    %v1018 = vpop.permute.xlu0 %1017
    %v1020 = vmul.f32 %v1015, %v1018
    %v1021 = vmul.f32 %v1003, %v943
    %v1022 = vadd.f32 %v1020, %v1021
    %1024 = vset.pattern.permute.xlu0 0
    %1025 = vperm.xlu0 %1024, %v381
    %v1026 = vpop.permute.xlu0 %1025
    %v1028 = vmul.f32 %v1026, %v1022
    %v1029 = vsub.f32 1.0, %v381
    %1031 = vset.pattern.permute.xlu0 0
    %1032 = vperm.xlu0 %1031, %v1029
    %v1033 = vpop.permute.xlu0 %1032
    %v1035 = vmul.f32 %v1033, %v943
    %v1036 = vadd.f32 %v1028, %v1035
    %1038 = vrot.lane.b32.xlu0 %v1036, 96
    %v1039 = vpop.permute.xlu0 %1038
    %s1041 = scalar_lea.vmem [#allocation2], 48
    %1042 = vst.msk [vmem:[%s1041] sm:$0xff] %vm172, %v1039
    %v1043 = vld [vmem:[#allocation2] sm:$0xff]
    %v1044 = vld [vmem:[#allocation2 + $0x8] sm:$0xff]
    %v1045 = vld [vmem:[#allocation2 + $0x10] sm:$0xff]
    %v1046 = vld [vmem:[#allocation2 + $0x18] sm:$0xff]
    %v1047 = vld [vmem:[#allocation2 + $0x20] sm:$0xff]
    %v1048 = vld [vmem:[#allocation2 + $0x28] sm:$0xff]
    %v1049 = vld [vmem:[#allocation2 + $0x30] sm:$0xff]
    %v1050 = vlaneseq
    %v1051 = vshrl.u32 %v1050, 7
    %v1052 = vsub.s32 0, %v1051
    %v1053 = vrot.slane %v42, %v1052
    %v1055 = vsel %vm172, %v1043, 0
    %v1058 = vsel %vm172, %v1044, 0
    %v1061 = vsel %vm172, %v1045, 0
    %v1064 = vsel %vm172, %v1046, 0
    %v1067 = vsel %vm172, %v1047, 0
    %v1070 = vsel %vm172, %v1048, 0
    %v1073 = vsel %vm172, %v1049, 0
    %1075 = vmatprep.subr.mxu0 0.0
    %1076 = vmatpush1.msra.mxu0 %v35
    %1077 = vmatprep.subr.mxu0 0.0
    %1078 = vmatpush1.msra.mxu0 %v36
    %1079 = vmatprep.subr.mxu0 0.0
    %1080 = vmatpush1.msra.mxu0 %v37
    %1081 = vmatprep.subr.mxu0 0.0
    %1082 = vmatpush1.msra.mxu0 %v38
    %1083 = vmatprep.subr.mxu0 0.0
    %1084 = vmatpush1.msra.mxu0 0.0
    %1085 = vmatprep.subr.mxu0 0.0
    %1086 = vmatpush1.msra.mxu0 0.0
    %1087 = vmatprep.subr.mxu0 0.0
    %1088 = vmatpush1.msra.mxu0 0.0
    %1089 = vmatprep.subr.mxu0 0.0
    %1090 = vmatpush1.msra.mxu0 0.0
    %1091 = vmatprep.subr.mxu0 0.0
    %1092 = vmatpush1.msra.mxu0 0.0
    %1093 = vmatprep.subr.mxu0 0.0
    %1094 = vmatpush1.msra.mxu0 0.0
    %1095 = vmatprep.subr.mxu0 0.0
    %1096 = vmatpush1.msra.mxu0 0.0
    %1097 = vmatprep.subr.mxu0 0.0
    %1098 = vmatpush1.msra.mxu0 0.0
    %1099 = vmatprep.subr.mxu0 0.0
    %1100 = vmatpush1.msra.mxu0 0.0
    %1101 = vmatprep.subr.mxu0 0.0
    %1102 = vmatpush1.msra.mxu0 0.0
    %1103 = vmatprep.subr.mxu0 0.0
    %1104 = vmatpush1.msra.mxu0 0.0
    %1105 = vmatprep.subr.mxu0 0.0
    %1106 = vmatpush1.msra.mxu0 0.0
    %1107 = vmatprep.subr.mxu0 0.0
    %1108 = vmatpush1.msra.mxu0 0.0
    %1109 = vmatprep.subr.mxu0 0.0
    %1110 = vmatpush1.msra.mxu0 0.0
    %1111 = vmatprep.subr.mxu0 0.0
    %1112 = vmatpush1.msra.mxu0 0.0
    %1113 = vmatprep.subr.mxu0 0.0
    %1114 = vmatpush1.msra.mxu0 0.0
    %1115 = vmatprep.subr.mxu0 0.0
    %1116 = vmatpush1.msra.mxu0 0.0
    %1117 = vmatprep.subr.mxu0 0.0
    %1118 = vmatpush1.msra.mxu0 0.0
    %1119 = vmatprep.subr.mxu0 0.0
    %1120 = vmatpush1.msra.mxu0 0.0
    %1121 = vmatprep.subr.mxu0 0.0
    %1122 = vmatpush1.msra.mxu0 0.0
    %1123 = vmatprep.subr.mxu0 0.0
    %1124 = vmatpush1.msra.mxu0 0.0
    %1125 = vmatprep.subr.mxu0 0.0
    %1126 = vmatpush1.msra.mxu0 0.0
    %1127 = vmatprep.subr.mxu0 0.0
    %1128 = vmatpush1.msra.mxu0 0.0
    %1129 = vmatprep.subr.mxu0 0.0
    %1130 = vmatpush1.msra.mxu0 0.0
    %1131 = vmatprep.subr.mxu0 0.0
    %1132 = vmatpush1.msra.mxu0 0.0
    %1133 = vmatprep.subr.mxu0 0.0
    %1134 = vmatpush1.msra.mxu0 0.0
    %1135 = vmatprep.subr.mxu0 0.0
    %1136 = vmatpush1.msra.mxu0 0.0
    %1137 = vmatprep.subr.mxu0 0.0
    %1138 = vmatpush1.msra.mxu0 0.0
    %1139 = vmatprep.mubr.f32.mxu0 0.0
    %1140 = vmatmul.mubr.f32.gmra.mrb[0].mxu0 %v1055
    %v1141 = vpop.f32.mrb[0].mxu0
    %v1142 = vadd.f32 %v1053, %v1141
    %v1143 = vpop.f32.mrb[0].mxu0
    %1144 = vmatprep.mubr.f32.mxu0 0.0
    %1145 = vmatmul.mubr.f32.gmra.mrb[0].mxu0 %v1058
    %v1146 = vpop.f32.mrb[0].mxu0
    %v1147 = vadd.f32 %v1053, %v1146
    %v1148 = vpop.f32.mrb[0].mxu0
    %1149 = vmatprep.mubr.f32.mxu0 0.0
    %1150 = vmatmul.mubr.f32.gmra.mrb[0].mxu0 %v1061
    %v1151 = vpop.f32.mrb[0].mxu0
    %v1152 = vadd.f32 %v1053, %v1151
    %v1153 = vpop.f32.mrb[0].mxu0
    %1154 = vmatprep.mubr.f32.mxu0 0.0
    %1155 = vmatmul.mubr.f32.gmra.mrb[0].mxu0 %v1064
    %v1156 = vpop.f32.mrb[0].mxu0
    %v1157 = vadd.f32 %v1053, %v1156
    %v1158 = vpop.f32.mrb[0].mxu0
    %1159 = vmatprep.mubr.f32.mxu0 0.0
    %1160 = vmatmul.mubr.f32.gmra.mrb[0].mxu0 %v1067
    %v1161 = vpop.f32.mrb[0].mxu0
    %v1162 = vadd.f32 %v1053, %v1161
    %v1163 = vpop.f32.mrb[0].mxu0
    %1164 = vmatprep.mubr.f32.mxu0 0.0
    %1165 = vmatmul.mubr.f32.gmra.mrb[0].mxu0 %v1070
    %v1166 = vpop.f32.mrb[0].mxu0
    %v1167 = vadd.f32 %v1053, %v1166
    %v1168 = vpop.f32.mrb[0].mxu0
    %1169 = vmatprep.mubr.f32.mxu0 0.0
    %1170 = vmatmul.mubr.f32.gmra.mrb[0].mxu0 %v1073
    %v1171 = vpop.f32.mrb[0].mxu0
    %v1172 = vadd.f32 %v1053, %v1171
    %v1173 = vpop.f32.mrb[0].mxu0
    %1174 = vdwg.mxu0
    %v1175 = vsel %vm172, %v1142, -inf
    %1176 = vmax.xlane.f32.xlu0 %v1175
    %v1177 = vpop.xlane.xlu0 %1176
    %v1178 = vsel %vm172, %v1147, -inf
    %1179 = vmax.xlane.f32.xlu0 %v1178
    %v1180 = vpop.xlane.xlu0 %1179
    %v1181 = vsel %vm172, %v1152, -inf
    %1182 = vmax.xlane.f32.xlu0 %v1181
    %v1183 = vpop.xlane.xlu0 %1182
    %v1184 = vsel %vm172, %v1157, -inf
    %1185 = vmax.xlane.f32.xlu0 %v1184
    %v1186 = vpop.xlane.xlu0 %1185
    %v1187 = vsel %vm172, %v1162, -inf
    %1188 = vmax.xlane.f32.xlu0 %v1187
    %v1189 = vpop.xlane.xlu0 %1188
    %v1190 = vsel %vm172, %v1167, -inf
    %1191 = vmax.xlane.f32.xlu0 %v1190
    %v1192 = vpop.xlane.xlu0 %1191
    %v1193 = vsel %vm172, %v1172, -inf
    %1194 = vmax.xlane.f32.xlu0 %v1193
    %v1195 = vpop.xlane.xlu0 %1194
    %v1196 = vsub.f32 %v1142, %v1177
    %v1197 = vsub.f32 %v1147, %v1180
    %v1198 = vsub.f32 %v1152, %v1183
    %v1199 = vsub.f32 %v1157, %v1186
    %v1200 = vsub.f32 %v1162, %v1189
    %v1201 = vsub.f32 %v1167, %v1192
    %v1202 = vsub.f32 %v1172, %v1195
    %v1203 = vmul.f32 %v1196, 1.442695
    %v1204 = vpow.pop %v1203
    %v1205 = vmul.f32 %v1197, 1.442695
    %v1206 = vpow.pop %v1205
    %v1207 = vmul.f32 %v1198, 1.442695
    %v1208 = vpow.pop %v1207
    %v1209 = vmul.f32 %v1199, 1.442695
    %v1210 = vpow.pop %v1209
    %v1211 = vmul.f32 %v1200, 1.442695
    %v1212 = vpow.pop %v1211
    %v1213 = vmul.f32 %v1201, 1.442695
    %v1214 = vpow.pop %v1213
    %v1215 = vmul.f32 %v1202, 1.442695
    %v1216 = vpow.pop %v1215
    %v1217 = vsel %vm172, %v1204, 0.0
    %1218 = vadd.xlane.f32.xlu0 %v1217
    %v1219 = vpop.xlane.xlu0 %1218
    %v1220 = vsel %vm172, %v1206, 0.0
    %1221 = vadd.xlane.f32.xlu0 %v1220
    %v1222 = vpop.xlane.xlu0 %1221
    %v1223 = vsel %vm172, %v1208, 0.0
    %1224 = vadd.xlane.f32.xlu0 %v1223
    %v1225 = vpop.xlane.xlu0 %1224
    %v1226 = vsel %vm172, %v1210, 0.0
    %1227 = vadd.xlane.f32.xlu0 %v1226
    %v1228 = vpop.xlane.xlu0 %1227
    %v1229 = vsel %vm172, %v1212, 0.0
    %1230 = vadd.xlane.f32.xlu0 %v1229
    %v1231 = vpop.xlane.xlu0 %1230
    %v1232 = vsel %vm172, %v1214, 0.0
    %1233 = vadd.xlane.f32.xlu0 %v1232
    %v1234 = vpop.xlane.xlu0 %1233
    %v1235 = vsel %vm172, %v1216, 0.0
    %1236 = vadd.xlane.f32.xlu0 %v1235
    %v1237 = vpop.xlane.xlu0 %1236
    %v1238 = vlog2.pop %v1219
    %v1239 = vmul.f32 %v1238, 0.6931472
    %v1240 = vlog2.pop %v1222
    %v1241 = vmul.f32 %v1240, 0.6931472
    %v1242 = vlog2.pop %v1225
    %v1243 = vmul.f32 %v1242, 0.6931472
    %v1244 = vlog2.pop %v1228
    %v1245 = vmul.f32 %v1244, 0.6931472
    %v1246 = vlog2.pop %v1231
    %v1247 = vmul.f32 %v1246, 0.6931472
    %v1248 = vlog2.pop %v1234
    %v1249 = vmul.f32 %v1248, 0.6931472
    %v1250 = vlog2.pop %v1237
    %v1251 = vmul.f32 %v1250, 0.6931472
    %v1252 = vadd.f32 %v1177, %v1239
    %v1253 = vadd.f32 %v1180, %v1241
    %v1254 = vadd.f32 %v1183, %v1243
    %v1255 = vadd.f32 %v1186, %v1245
    %v1256 = vadd.f32 %v1189, %v1247
    %v1257 = vadd.f32 %v1192, %v1249
    %v1258 = vadd.f32 %v1195, %v1251
    %1259 = vset.pattern.permute.xlu0 1
    %1260 = vperm.xlu0 %1259, %v123
    %v1261 = vpop.permute.xlu0 %1260
    %1262 = vset.pattern.permute.xlu0 1
    %1263 = vperm.xlu0 %1262, %v124
    %v1264 = vpop.permute.xlu0 %1263
    %1265 = vset.pattern.permute.xlu0 1
    %1266 = vperm.xlu0 %1265, %v125
    %v1267 = vpop.permute.xlu0 %1266
    %1268 = vset.pattern.permute.xlu0 1
    %1269 = vperm.xlu0 %1268, %v126
    %v1270 = vpop.permute.xlu0 %1269
    %1271 = vset.pattern.permute.xlu0 1
    %1272 = vperm.xlu0 %1271, %v127
    %v1273 = vpop.permute.xlu0 %1272
    %1274 = vset.pattern.permute.xlu0 1
    %1275 = vperm.xlu0 %1274, %v128
    %v1276 = vpop.permute.xlu0 %1275
    %1277 = vset.pattern.permute.xlu0 1
    %1278 = vperm.xlu0 %1277, %v129
    %v1279 = vpop.permute.xlu0 %1278
    %vm1280 = vcmp.eq.s32.totalorder %v122, %v1261
    %vm1281 = vcmp.eq.s32.totalorder %v122, %v1264
    %vm1282 = vcmp.eq.s32.totalorder %v122, %v1267
    %vm1283 = vcmp.eq.s32.totalorder %v122, %v1270
    %vm1284 = vcmp.eq.s32.totalorder %v122, %v1273
    %vm1285 = vcmp.eq.s32.totalorder %v122, %v1276
    %vm1286 = vcmp.eq.s32.totalorder %v122, %v1279
    %v1287 = vsel %vm1280, %v1142, 0.0
    %v1288 = vsel %vm1281, %v1147, 0.0
    %v1289 = vsel %vm1282, %v1152, 0.0
    %v1290 = vsel %vm1283, %v1157, 0.0
    %v1291 = vsel %vm1284, %v1162, 0.0
    %v1292 = vsel %vm1285, %v1167, 0.0
    %v1293 = vsel %vm1286, %v1172, 0.0
    %v1294 = vsel %vm172, %v1287, 0.0
    %1295 = vadd.xlane.f32.xlu0 %v1294
    %v1296 = vpop.xlane.xlu0 %1295
    %v1297 = vsel %vm172, %v1288, 0.0
    %1298 = vadd.xlane.f32.xlu0 %v1297
    %v1299 = vpop.xlane.xlu0 %1298
    %v1300 = vsel %vm172, %v1289, 0.0
    %1301 = vadd.xlane.f32.xlu0 %v1300
    %v1302 = vpop.xlane.xlu0 %1301
    %v1303 = vsel %vm172, %v1290, 0.0
    %1304 = vadd.xlane.f32.xlu0 %v1303
    %v1305 = vpop.xlane.xlu0 %1304
    %v1306 = vsel %vm172, %v1291, 0.0
    %1307 = vadd.xlane.f32.xlu0 %v1306
    %v1308 = vpop.xlane.xlu0 %1307
    %v1309 = vsel %vm172, %v1292, 0.0
    %1310 = vadd.xlane.f32.xlu0 %v1309
    %v1311 = vpop.xlane.xlu0 %1310
    %v1312 = vsel %vm172, %v1293, 0.0
    %1313 = vadd.xlane.f32.xlu0 %v1312
    %v1314 = vpop.xlane.xlu0 %1313
    %v1315 = vsub.f32 %v1252, %v1296
    %v1316 = vsub.f32 %v1253, %v1299
    %v1317 = vsub.f32 %v1254, %v1302
    %v1318 = vsub.f32 %v1255, %v1305
    %v1319 = vsub.f32 %v1256, %v1308
    %v1320 = vsub.f32 %v1257, %v1311
    %v1321 = vsub.f32 %v1258, %v1314
    %v1322 = vmul.f32 %v1315, %v375
    %v1323 = vmul.f32 %v1316, %v376
    %v1324 = vmul.f32 %v1317, %v377
    %v1325 = vmul.f32 %v1318, %v378
    %v1326 = vmul.f32 %v1319, %v379
    %v1327 = vmul.f32 %v1320, %v380
    %v1328 = vmul.f32 %v1321, %v381
    %vm1329 = vcmask 15368
    %v1330 = vsel %vm1329, %v1322, 0.0
    %v1331 = vsel %vm1329, %v1323, 0.0
    %v1332 = vadd.f32 %v1330, %v1331
    %v1333 = vsel %vm1329, %v1324, 0.0
    %v1334 = vadd.f32 %v1332, %v1333
    %v1335 = vsel %vm1329, %v1325, 0.0
    %v1336 = vadd.f32 %v1334, %v1335
    %v1337 = vsel %vm1329, %v1326, 0.0
    %v1338 = vadd.f32 %v1336, %v1337
    %v1339 = vsel %vm1329, %v1327, 0.0
    %v1340 = vadd.f32 %v1338, %v1339
    %v1341 = vsel %vm1329, %v1328, 0.0
    %v1342 = vadd.f32 %v1340, %v1341
    %v1343 = vsel %vm1329, %v375, 0.0
    %v1344 = vsel %vm1329, %v376, 0.0
    %v1345 = vadd.f32 %v1343, %v1344
    %v1346 = vsel %vm1329, %v377, 0.0
    %v1347 = vadd.f32 %v1345, %v1346
    %v1348 = vsel %vm1329, %v378, 0.0
    %v1349 = vadd.f32 %v1347, %v1348
    %v1350 = vsel %vm1329, %v379, 0.0
    %v1351 = vadd.f32 %v1349, %v1350
    %v1352 = vsel %vm1329, %v380, 0.0
    %v1353 = vadd.f32 %v1351, %v1352
    %v1354 = vsel %vm1329, %v381, 0.0
    %v1355 = vadd.f32 %v1353, %v1354
    %v1356 = vmax.f32 %v1355, 1.0
    %v1357 = vrcp.pop %v1356
    %v1358 = vmul.f32 %v1342, %v1357
    %v1359 = vlaneseq
    %v1360 = vshrl.u32 %v1359, 7
    %vm1361 = vcmp.lt.s32.totalorder %v1360, 2
    %v1362 = vsel %vm1361, 1, 0
    %v1363 = vcvt.s32.f32 %v1362
    %v1364 = vmul.f32 %v1358, %v1363
    %1366 = vrot.lane.b32.xlu0 %v1364, 127
    %v1367 = vpop.permute.xlu0 %1366
    %vm1369 = vcmask 7168
    %v1370 = vsel %vm1369, %v1367, 0.0
    %1371 = vadd.xlane.f32.xlu0 %v1370
    %v1372 = vpop.xlane.xlu0 %1371
    %v1373 = vrot.slane %v1372, 4
    %v1374 = vadd.f32 %v1372, %v1373
    %v1375 = vrot.slane %v1374, 2
    %v1376 = vadd.f32 %v1374, %v1375
    %v1377 = vrot.slane %v1376, 1
    %v1378 = vadd.f32 %v1376, %v1377
    %s1379 = vtos %v1378
    %v1380 = vrcp.pop 2.0
    %s1381 = vtos %v1380
    %s1382 = smul.f32 %s1379, %s1381
    %v1383 = vstv %s1382
    %vm1384 = vcmask 0
    %1385 = vst.msk [vmem:[#allocation3] sm:$0x1] %vm1384, %v1383
    // Predicated region
    $region22: #{gru_cat_forward.1} parent=1 // pred_check
      _
    $region23: #{gru_cat_forward.1} parent=1 // pred_check_branch
      %1387 = sbr.rel (0) target = $region25
    $region24: #{gru_cat_forward.1} parent=1 // pred_region
      %s1389 = ssub.s32 16, 16
      %1390 = vsyncadd [#allocation4], %s1389
      %s1392 = sshll.u32 [#allocation3], 4
      %s1393 = int_to_ptr.vmem [resolvable:$true] %s1392
      %1395 = dma.vmem_to_hbm [thread:$0]  %s1393, 16, %s5, [#allocation4]
    $region25: #{gru_cat_forward.1} parent=1 // pred_fallthru
      _
    // Predicated region
    $region26: #{gru_cat_forward.1} parent=1 // pred_check
      _
    $region27: #{gru_cat_forward.1} parent=1 // pred_check_branch
      %1397 = sbr.rel (0) target = $region29
    $region28: #{gru_cat_forward.1} parent=1 // pred_region
      %1398 = dma.done [#allocation4], 16
    $region29: #{gru_cat_forward.1} parent=1 // pred_fallthru
      _
    %1399 = vsyncpa [#allocation4], 1

</llo_original>
